<compile_context>
chip_gen: v6e
topology: v6e:2x2x1
jax: 0.10.0
libtpu: 0.0.40
codegen_flags: <defaults>
</compile_context>

<pallas_src>
import math

import jax
import jax.numpy as jnp
from jax import lax
from jax.experimental import pallas as pl
from jax.experimental.pallas import tpu as pltpu

# ----- small synthetic Gemma config (quant=False) -----
HIDDEN = 32
N_LAYERS = 2
N_HEADS = 4
N_KV_HEADS = 2
HEAD_DIM = 8
INTERMEDIATE = 64
RMS_EPS = 1e-6
ROPE_THETA = 10000.0

GROUP = N_HEADS // N_KV_HEADS
Q_SIZE = N_HEADS * HEAD_DIM
KV_SIZE = N_KV_HEADS * HEAD_DIM
QKV_OUT = Q_SIZE + 2 * KV_SIZE
Q_HALF = Q_SIZE // 2
KV_HALF = KV_SIZE // 2
MASK_VALUE = -1e30


# ---------------------------------------------------------------------------
# Fused whole-model kernel: one grid step == one batch element.
# ---------------------------------------------------------------------------
def _gemma_kernel(h_ref, cos_ref, sin_ref, wqkv_ref, wo_ref, wgu_ref, wd_ref,
                  ln_in_ref, ln_post_ref, final_ln_ref, o_ref):
    S, H = h_ref.shape                       # (8, 32) after the batch squeeze
    D, D2 = HEAD_DIM, HEAD_DIM // 2

    h = h_ref[...].astype(jnp.float32)       # hidden state stays f32 (S, H)

    # ----- hoisted once per grid step (JAX does not CSE broadcasts) -----
    scaling = HEAD_DIM ** (-0.5)
    cos_full = cos_ref[...]                  # (S, Q_HALF) pre-tiled in wrapper
    sin_full = sin_ref[...]
    cos_q = cos_full * scaling               # fold 1/sqrt(D) into q's rotation
    sin_q = sin_full * scaling
    cos_k = cos_full[:, :KV_HALF]            # (S, KV_HALF) — leading columns
    sin_k = sin_full[:, :KV_HALF]

    # Causal additive mask generated in-kernel (no (B,S,S) HBM mask traffic),
    # with the query group folded into M.
    # TODO(synk): an arbitrary (non-causal) mask would have to be streamed in
    # as an extra input; GemmaModel is only exercised with causal masks here.
    row = lax.broadcasted_iota(jnp.int32, (S, S), 0)
    col = lax.broadcasted_iota(jnp.int32, (S, S), 1)
    causal = jnp.where(row >= col, 0.0, MASK_VALUE).astype(jnp.float32)
    causal_g = jnp.tile(causal, (GROUP, 1))  # (G*S, S)

    gelu_c = math.sqrt(2.0 / math.pi)

    def rmsnorm(x, w1):                      # x (S,H) f32, w1 = 1 + weight, (1,H)
        var = jnp.mean(x * x, axis=-1, keepdims=True)
        return x * lax.rsqrt(var + RMS_EPS) * w1

    for layer in range(N_LAYERS):
        wqkv = wqkv_ref[layer]               # (H, QKV_OUT) bf16, Q/K cols permuted
        wo = wo_ref[layer]                   # (Q_SIZE, H)  bf16
        wgu = wgu_ref[layer]                 # (H, 2*I)     bf16 (gate | up fused)
        wd = wd_ref[layer]                   # (I, H)       bf16
        w_in = ln_in_ref[layer]              # (1, H) f32, already 1 + weight
        w_post = ln_post_ref[layer]

        # ---------------- attention ----------------
        xn = rmsnorm(h, w_in).astype(jnp.bfloat16)
        qkv = jnp.dot(xn, wqkv, preferred_element_type=jnp.float32)   # (S, QKV_OUT)

        # halves-grouped Q/K layout (from the wrapper-side column permutation):
        q1 = qkv[:, :Q_HALF]                              # all heads, dims 0..D/2-1
        q2 = qkv[:, Q_HALF:Q_SIZE]                        # all heads, dims D/2..D-1
        k1 = qkv[:, Q_SIZE:Q_SIZE + KV_HALF]
        k2 = qkv[:, Q_SIZE + KV_HALF:Q_SIZE + KV_SIZE]
        xv = qkv[:, Q_SIZE + KV_SIZE:]                    # (S, KV_SIZE)

        # Full-width rotate-half RoPE (split-half pairing, as in the reference
        # apply_rotary_emb).  Pure VPU; the two rotated half blocks are kept
        # separate and the score matmul contracts them as two partial dots.
        q1r = (q1 * cos_q - q2 * sin_q).astype(jnp.bfloat16)   # (S, Q_HALF)
        q2r = (q1 * sin_q + q2 * cos_q).astype(jnp.bfloat16)
        k1r = (k1 * cos_k - k2 * sin_k).astype(jnp.bfloat16)   # (S, KV_HALF)
        k2r = (k1 * sin_k + k2 * cos_k).astype(jnp.bfloat16)

        for kvh in range(N_KV_HEADS):
            gbase = kvh * GROUP
            kh1 = k1r[:, kvh * D2:(kvh + 1) * D2]         # (S, D/2)
            kh2 = k2r[:, kvh * D2:(kvh + 1) * D2]
            v_h = xv[:, kvh * D:(kvh + 1) * D].astype(jnp.bfloat16)   # (S, D)

            # Fold the query group into M (cheap sublane concat of (S, D/2)
            # slices) so each KV head does one score/PV pass.
            qg1 = jnp.concatenate(
                [q1r[:, (gbase + g) * D2:(gbase + g + 1) * D2]
                 for g in range(GROUP)], axis=0)                       # (G*S, D/2)
            qg2 = jnp.concatenate(
                [q2r[:, (gbase + g) * D2:(gbase + g + 1) * D2]
                 for g in range(GROUP)], axis=0)

            s = lax.dot_general(qg1, kh1, (((1,), (1,)), ((), ())),
                                preferred_element_type=jnp.float32)
            s = s + lax.dot_general(qg2, kh2, (((1,), (1,)), ((), ())),
                                    preferred_element_type=jnp.float32)
            s = s + causal_g                                           # (G*S, S)

            m = jnp.max(s, axis=-1, keepdims=True)
            e = jnp.exp(s - m)
            l_sum = jnp.sum(e, axis=-1, keepdims=True)
            # Un-normalized PV matmul; the softmax denominator is applied on
            # the (G*S, D)-shaped output (D-wide instead of S-wide multiplies).
            o_g = jnp.dot(e.astype(jnp.bfloat16), v_h,
                          preferred_element_type=jnp.float32)          # (G*S, D)
            o_g = o_g * pl.reciprocal(l_sum, approx=True)

            # o-projection consumed per head straight from the group-folded
            # layout (sublane slices only) — no `heads` list / lane concat.
            for g in range(GROUP):
                o_h = o_g[g * S:(g + 1) * S, :].astype(jnp.bfloat16)   # (S, D)
                w_oh = wo[(gbase + g) * D:(gbase + g + 1) * D, :]      # (D, H)
                h = h + jnp.dot(o_h, w_oh, preferred_element_type=jnp.float32)

        # ---------------- MLP (fused gate|up 128-lane matmul) ----------------
        xn = rmsnorm(h, w_post).astype(jnp.bfloat16)
        gu = jnp.dot(xn, wgu, preferred_element_type=jnp.float32)      # (S, 2*I)
        gate = gu[:, :INTERMEDIATE]
        up = gu[:, INTERMEDIATE:]
        gate = 0.5 * gate * (1.0 + jnp.tanh(
            gelu_c * (gate + 0.044715 * gate * gate * gate)))          # tanh GELU
        h = h + jnp.dot((gate * up).astype(jnp.bfloat16), wd,
                        preferred_element_type=jnp.float32)

    y = rmsnorm(h, final_ln_ref[...])                                  # (S, H) f32
    # Lane-dense output store: emit one (1, S*H) = (1, 256) slab instead of a
    # 32-lane masked (S, H) store; the wrapper reshapes back to (B, S, H).
    o_ref[...] = jnp.concatenate([y[s:s + 1, :] for s in range(S)], axis=1)


# ---------------------------------------------------------------------------
# Wrapper
# ---------------------------------------------------------------------------
def gemma_forward(params, hidden_states, cos, sin):
    B, S, H = hidden_states.shape
    # Pre-tile cos/sin to the full Q half-width (review: pre-broadcast in the
    # wrapper; the kernel slices the leading KV_HALF columns for K).
    cos_q = jnp.tile(cos, (1, N_HEADS))          # (S, Q_HALF)
    sin_q = jnp.tile(sin, (1, N_HEADS))

    full3 = lambda b: (0, 0, 0)
    full2 = lambda b: (0, 0)
    out = pl.pallas_call(
        _gemma_kernel,
        out_shape=jax.ShapeDtypeStruct((B, 1, S * H), jnp.float32),
        grid=(B,),
        in_specs=[
            pl.BlockSpec((None, S, H), lambda b: (b, 0, 0)),               # hidden
            pl.BlockSpec((S, Q_HALF), full2),                              # cos (tiled)
            pl.BlockSpec((S, Q_HALF), full2),                              # sin (tiled)
            pl.BlockSpec((N_LAYERS, HIDDEN, QKV_OUT), full3),              # wqkv (perm)
            pl.BlockSpec((N_LAYERS, Q_SIZE, HIDDEN), full3),               # wo
            pl.BlockSpec((N_LAYERS, HIDDEN, 2 * INTERMEDIATE), full3),     # wgu
            pl.BlockSpec((N_LAYERS, INTERMEDIATE, HIDDEN), full3),         # wd
            pl.BlockSpec((N_LAYERS, 1, HIDDEN), full3),                    # 1+ln_in
            pl.BlockSpec((N_LAYERS, 1, HIDDEN), full3),                    # 1+ln_post
            pl.BlockSpec((1, HIDDEN), full2),                              # 1+final_ln
        ],
        out_specs=pl.BlockSpec((None, 1, S * H), lambda b: (b, 0, 0)),
        compiler_params=pltpu.CompilerParams(
            # (batch,) maps onto v7x's 2 TCs; single-TC v5e/v6e just loop.
            dimension_semantics=("parallel",),
            # All resident weights + double-buffered activation blocks total
            # well under 1 MiB at this config; 4 MiB is ample headroom.
            vmem_limit_bytes=4 * 1024 * 1024),
    )(hidden_states, cos_q, sin_q,
      params['wqkv'], params['wo'], params['wgu'], params['wd'],
      params['ln_in_p1'], params['ln_post_p1'], params['final_ln_p1'])
    return out.reshape(B, S, H)


def precompute_rope(dim, end, theta=ROPE_THETA):
    inv = 1.0 / (theta ** (jnp.arange(0, dim, 2, dtype=jnp.float32)[: dim // 2] / dim))
    t = jnp.arange(end, dtype=jnp.float32)
    freqs = jnp.outer(t, inv)                     # (end, dim/2)
    return jnp.cos(freqs), jnp.sin(freqs)         # real / imag of freqs_cis


def _rope_half_perm(n_heads, head_dim):
    """Column permutation grouping all heads' first halves, then second halves."""
    idx = jnp.arange(n_heads * head_dim, dtype=jnp.int32).reshape(
        n_heads, 2, head_dim // 2)
    return jnp.concatenate([idx[:, 0, :].reshape(-1), idx[:, 1, :].reshape(-1)])


def init_params(key):
    ks = jax.random.split(key, 5)

    def w(k, shape):
        # Weights stored pre-transposed [in, out] (== nn.Linear weight.T), bf16;
        # all matmuls accumulate in f32 on the MXU.
        return (jax.random.normal(k, shape, jnp.float32) * 0.02).astype(jnp.bfloat16)

    wqkv = w(ks[0], (N_LAYERS, HIDDEN, QKV_OUT))        # qkv_proj.weight.T
    wo = w(ks[1], (N_LAYERS, Q_SIZE, HIDDEN))           # o_proj.weight.T
    wg = w(ks[2], (N_LAYERS, HIDDEN, INTERMEDIATE))     # gate_proj.weight.T
    wu = w(ks[3], (N_LAYERS, HIDDEN, INTERMEDIATE))     # up_proj.weight.T
    wd = w(ks[4], (N_LAYERS, INTERMEDIATE, HIDDEN))     # down_proj.weight.T

    # One-time kernel-layout transforms (would be applied when importing the
    # PyTorch checkpoint):
    #  1) permute Q / K output columns into halves-grouped order so RoPE runs
    #     full-width in the kernel (dot products are invariant to the perm);
    q_perm = _rope_half_perm(N_HEADS, HEAD_DIM)
    k_perm = Q_SIZE + _rope_half_perm(N_KV_HEADS, HEAD_DIM)
    v_cols = Q_SIZE + KV_SIZE + jnp.arange(KV_SIZE, dtype=jnp.int32)
    wqkv = wqkv[:, :, jnp.concatenate([q_perm, k_perm, v_cols])]
    #  2) fuse gate + up into a single (H, 2*I) weight (one 128-lane matmul);
    wgu = jnp.concatenate([wg, wu], axis=-1)
    #  3) RMSNorm weights with Gemma's unit offset pre-added (weight init = 0).
    return {
        'wqkv': wqkv,
        'wo': wo,
        'wgu': wgu,
        'wd': wd,
        'ln_in_p1': jnp.ones((N_LAYERS, 1, HIDDEN), jnp.float32),
        'ln_post_p1': jnp.ones((N_LAYERS, 1, HIDDEN), jnp.float32),
        'final_ln_p1': jnp.ones((1, HIDDEN), jnp.float32),
    }


if __name__ == "__main__":
    key = jax.random.PRNGKey(0)
    pkey, hkey = jax.random.split(key)
    params = init_params(pkey)

    B, S = 2, 8        # B == 2 keeps both v7x TensorCores busy
    hidden_states = jax.random.normal(hkey, (B, S, HIDDEN), jnp.float32)
    cos, sin = precompute_rope(HEAD_DIM, S)

    out = jax.jit(gemma_forward)(params, hidden_states, cos, sin)
    jax.block_until_ready(out)
    assert out.shape == (B, S, HIDDEN) and out.dtype == jnp.float32
    assert bool(jnp.all(jnp.isfinite(out)))
    print("KERNEL_OK")
</pallas_src>

<mosaic_0001>
module attributes {stable_mosaic.version = 11 : i64} {
  func.func @_gemma_kernel(%arg0: i32, %arg1: memref<1x8x32xf32, #tpu.memory_space<vmem>>, %arg2: memref<8x16xf32, #tpu.memory_space<vmem>>, %arg3: memref<8x16xf32, #tpu.memory_space<vmem>>, %arg4: memref<2x32x64xbf16, #tpu.memory_space<vmem>>, %arg5: memref<2x32x32xbf16, #tpu.memory_space<vmem>>, %arg6: memref<2x32x128xbf16, #tpu.memory_space<vmem>>, %arg7: memref<2x64x32xbf16, #tpu.memory_space<vmem>>, %arg8: memref<2x1x32xf32, #tpu.memory_space<vmem>>, %arg9: memref<2x1x32xf32, #tpu.memory_space<vmem>>, %arg10: memref<1x32xf32, #tpu.memory_space<vmem>>, %arg11: memref<1x1x256xf32, #tpu.memory_space<vmem>>) attributes {dimension_semantics = [#tpu.dimension_semantics<parallel>], iteration_bounds = array<i64: 2>, scalar_prefetch = 0 : i64, scratch_operands = 0 : i64, tpu.core_type = #tpu.core_type<tc>, window_params = [{transform_indices = @transform_0, window_bounds = array<i64: 1, 8, 32>}, {pipeline_mode = #tpu.pipeline_mode<synchronous>, transform_indices = @transform_1, window_bounds = array<i64: 8, 16>}, {pipeline_mode = #tpu.pipeline_mode<synchronous>, transform_indices = @transform_2, window_bounds = array<i64: 8, 16>}, {pipeline_mode = #tpu.pipeline_mode<synchronous>, transform_indices = @transform_3, window_bounds = array<i64: 2, 32, 64>}, {pipeline_mode = #tpu.pipeline_mode<synchronous>, transform_indices = @transform_4, window_bounds = array<i64: 2, 32, 32>}, {pipeline_mode = #tpu.pipeline_mode<synchronous>, transform_indices = @transform_5, window_bounds = array<i64: 2, 32, 128>}, {pipeline_mode = #tpu.pipeline_mode<synchronous>, transform_indices = @transform_6, window_bounds = array<i64: 2, 64, 32>}, {pipeline_mode = #tpu.pipeline_mode<synchronous>, transform_indices = @transform_7, window_bounds = array<i64: 2, 1, 32>}, {pipeline_mode = #tpu.pipeline_mode<synchronous>, transform_indices = @transform_8, window_bounds = array<i64: 2, 1, 32>}, {pipeline_mode = #tpu.pipeline_mode<synchronous>, transform_indices = @transform_9, window_bounds = array<i64: 1, 32>}, {transform_indices = @transform_10, window_bounds = array<i64: 1, 1, 256>}]} {
    %c0 = arith.constant 0 : index
    %c0_0 = arith.constant 0 : index
    %c0_1 = arith.constant 0 : index
    %0 = vector.load %arg1[%c0, %c0_0, %c0_1] : memref<1x8x32xf32, #tpu.memory_space<vmem>>, vector<1x8x32xf32>
    %1 = vector.shape_cast %0 : vector<1x8x32xf32> to vector<8x32xf32>
    %c0_2 = arith.constant 0 : index
    %c0_3 = arith.constant 0 : index
    %2 = vector.load %arg2[%c0_2, %c0_3] : memref<8x16xf32, #tpu.memory_space<vmem>>, vector<8x16xf32>
    %c0_4 = arith.constant 0 : index
    %c0_5 = arith.constant 0 : index
    %3 = vector.load %arg3[%c0_4, %c0_5] : memref<8x16xf32, #tpu.memory_space<vmem>>, vector<8x16xf32>
    %cst = arith.constant 0.353553385 : f32
    %4 = vector.broadcast %cst : f32 to vector<8x16xf32>
    %5 = arith.mulf %2, %4 : vector<8x16xf32>
    %cst_6 = arith.constant 0.353553385 : f32
    %6 = vector.broadcast %cst_6 : f32 to vector<8x16xf32>
    %7 = arith.mulf %3, %6 : vector<8x16xf32>
    %8 = vector.extract_strided_slice %2 {offsets = [0, 0], sizes = [8, 8], strides = [1, 1]} : vector<8x16xf32> to vector<8x8xf32>
    %9 = vector.extract_strided_slice %3 {offsets = [0, 0], sizes = [8, 8], strides = [1, 1]} : vector<8x16xf32> to vector<8x8xf32>
    %10 = tpu.iota {dimensions = array<i32: 0>} : vector<8x8xi32>
    %11 = tpu.iota {dimensions = array<i32: 1>} : vector<8x8xi32>
    %12 = arith.cmpi sge, %10, %11 : vector<8x8xi32>
    %cst_7 = arith.constant 0.000000e+00 : f32
    %cst_8 = arith.constant -1.000000e+30 : f32
    %13 = vector.broadcast %cst_7 : f32 to vector<8x8xf32>
    %14 = vector.broadcast %cst_8 : f32 to vector<8x8xf32>
    %15 = arith.select %12, %13, %14 : vector<8x8xi1>, vector<8x8xf32>
    %16 = tpu.concatenate %15, %15 in 0 : vector<8x8xf32>, vector<8x8xf32> -> vector<16x8xf32>
    %c0_9 = arith.constant 0 : index
    %c0_10 = arith.constant 0 : index
    %c0_11 = arith.constant 0 : index
    %17 = vector.load %arg4[%c0_9, %c0_10, %c0_11] : memref<2x32x64xbf16, #tpu.memory_space<vmem>>, vector<1x32x64xbf16>
    %18 = vector.shape_cast %17 : vector<1x32x64xbf16> to vector<32x64xbf16>
    %c0_12 = arith.constant 0 : index
    %c0_13 = arith.constant 0 : index
    %c0_14 = arith.constant 0 : index
    %19 = vector.load %arg5[%c0_12, %c0_13, %c0_14] : memref<2x32x32xbf16, #tpu.memory_space<vmem>>, vector<1x32x32xbf16>
    %20 = vector.shape_cast %19 : vector<1x32x32xbf16> to vector<32x32xbf16>
    %c0_15 = arith.constant 0 : index
    %c0_16 = arith.constant 0 : index
    %c0_17 = arith.constant 0 : index
    %21 = vector.load %arg6[%c0_15, %c0_16, %c0_17] : memref<2x32x128xbf16, #tpu.memory_space<vmem>>, vector<1x32x128xbf16>
    %22 = vector.shape_cast %21 : vector<1x32x128xbf16> to vector<32x128xbf16>
    %c0_18 = arith.constant 0 : index
    %c0_19 = arith.constant 0 : index
    %c0_20 = arith.constant 0 : index
    %23 = vector.load %arg7[%c0_18, %c0_19, %c0_20] : memref<2x64x32xbf16, #tpu.memory_space<vmem>>, vector<1x64x32xbf16>
    %24 = vector.shape_cast %23 : vector<1x64x32xbf16> to vector<64x32xbf16>
    %c0_21 = arith.constant 0 : index
    %c0_22 = arith.constant 0 : index
    %c0_23 = arith.constant 0 : index
    %25 = vector.load %arg8[%c0_21, %c0_22, %c0_23] : memref<2x1x32xf32, #tpu.memory_space<vmem>>, vector<1x1x32xf32>
    %26 = vector.shape_cast %25 : vector<1x1x32xf32> to vector<1x32xf32>
    %c0_24 = arith.constant 0 : index
    %c0_25 = arith.constant 0 : index
    %c0_26 = arith.constant 0 : index
    %27 = vector.load %arg9[%c0_24, %c0_25, %c0_26] : memref<2x1x32xf32, #tpu.memory_space<vmem>>, vector<1x1x32xf32>
    %28 = vector.shape_cast %27 : vector<1x1x32xf32> to vector<1x32xf32>
    %29 = arith.mulf %1, %1 : vector<8x32xf32>
    %cst_27 = arith.constant dense<0.000000e+00> : vector<8xf32>
    %30 = vector.multi_reduction <add>, %29, %cst_27 [1] : vector<8x32xf32> to vector<8xf32>
    %31 = vector.shape_cast %30 : vector<8xf32> to vector<8x1xf32>
    %cst_28 = arith.constant 3.200000e+01 : f32
    %32 = vector.broadcast %cst_28 : f32 to vector<8x1xf32>
    %33 = arith.divf %31, %32 : vector<8x1xf32>
    %cst_29 = arith.constant 9.99999997E-7 : f32
    %34 = vector.broadcast %cst_29 : f32 to vector<8x1xf32>
    %35 = arith.addf %33, %34 : vector<8x1xf32>
    %36 = math.rsqrt %35 : vector<8x1xf32>
    %37 = vector.broadcast %36 : vector<8x1xf32> to vector<8x32xf32>
    %38 = arith.mulf %1, %37 : vector<8x32xf32>
    %39 = vector.broadcast %26 : vector<1x32xf32> to vector<8x32xf32>
    %40 = arith.mulf %38, %39 : vector<8x32xf32>
    %41 = arith.truncf %40 : vector<8x32xf32> to vector<8x32xbf16>
    %cst_30 = arith.constant dense<0.000000e+00> : vector<8x64xf32>
    %42 = tpu.matmul %41, %18, %cst_30 {dimension_numbers = #tpu.dot_dimension_numbers<[1], [0], [0], [1], [0, 0, 1, 1], [], []>} : vector<8x32xbf16>, vector<32x64xbf16>, vector<8x64xf32> -> vector<8x64xf32>
    %43 = vector.extract_strided_slice %42 {offsets = [0, 0], sizes = [8, 16], strides = [1, 1]} : vector<8x64xf32> to vector<8x16xf32>
    %44 = vector.extract_strided_slice %42 {offsets = [0, 16], sizes = [8, 16], strides = [1, 1]} : vector<8x64xf32> to vector<8x16xf32>
    %45 = vector.extract_strided_slice %42 {offsets = [0, 32], sizes = [8, 8], strides = [1, 1]} : vector<8x64xf32> to vector<8x8xf32>
    %46 = vector.extract_strided_slice %42 {offsets = [0, 40], sizes = [8, 8], strides = [1, 1]} : vector<8x64xf32> to vector<8x8xf32>
    %47 = vector.extract_strided_slice %42 {offsets = [0, 48], sizes = [8, 16], strides = [1, 1]} : vector<8x64xf32> to vector<8x16xf32>
    %48 = arith.mulf %43, %5 : vector<8x16xf32>
    %49 = arith.mulf %44, %7 : vector<8x16xf32>
    %50 = arith.subf %48, %49 : vector<8x16xf32>
    %51 = arith.truncf %50 : vector<8x16xf32> to vector<8x16xbf16>
    %52 = arith.mulf %43, %7 : vector<8x16xf32>
    %53 = arith.mulf %44, %5 : vector<8x16xf32>
    %54 = arith.addf %52, %53 : vector<8x16xf32>
    %55 = arith.truncf %54 : vector<8x16xf32> to vector<8x16xbf16>
    %56 = arith.mulf %45, %8 : vector<8x8xf32>
    %57 = arith.mulf %46, %9 : vector<8x8xf32>
    %58 = arith.subf %56, %57 : vector<8x8xf32>
    %59 = arith.truncf %58 : vector<8x8xf32> to vector<8x8xbf16>
    %60 = arith.mulf %45, %9 : vector<8x8xf32>
    %61 = arith.mulf %46, %8 : vector<8x8xf32>
    %62 = arith.addf %60, %61 : vector<8x8xf32>
    %63 = arith.truncf %62 : vector<8x8xf32> to vector<8x8xbf16>
    %64 = vector.extract_strided_slice %59 {offsets = [0, 0], sizes = [8, 4], strides = [1, 1]} : vector<8x8xbf16> to vector<8x4xbf16>
    %65 = vector.extract_strided_slice %63 {offsets = [0, 0], sizes = [8, 4], strides = [1, 1]} : vector<8x8xbf16> to vector<8x4xbf16>
    %66 = vector.extract_strided_slice %47 {offsets = [0, 0], sizes = [8, 8], strides = [1, 1]} : vector<8x16xf32> to vector<8x8xf32>
    %67 = arith.truncf %66 : vector<8x8xf32> to vector<8x8xbf16>
    %68 = vector.extract_strided_slice %51 {offsets = [0, 0], sizes = [8, 4], strides = [1, 1]} : vector<8x16xbf16> to vector<8x4xbf16>
    %69 = vector.extract_strided_slice %51 {offsets = [0, 4], sizes = [8, 4], strides = [1, 1]} : vector<8x16xbf16> to vector<8x4xbf16>
    %70 = tpu.concatenate %68, %69 in 0 : vector<8x4xbf16>, vector<8x4xbf16> -> vector<16x4xbf16>
    %71 = vector.extract_strided_slice %55 {offsets = [0, 0], sizes = [8, 4], strides = [1, 1]} : vector<8x16xbf16> to vector<8x4xbf16>
    %72 = vector.extract_strided_slice %55 {offsets = [0, 4], sizes = [8, 4], strides = [1, 1]} : vector<8x16xbf16> to vector<8x4xbf16>
    %73 = tpu.concatenate %71, %72 in 0 : vector<8x4xbf16>, vector<8x4xbf16> -> vector<16x4xbf16>
    %cst_31 = arith.constant dense<0.000000e+00> : vector<16x8xf32>
    %74 = tpu.matmul %70, %64, %cst_31 {dimension_numbers = #tpu.dot_dimension_numbers<[1], [1], [0], [0], [0, 0, 1, 0], [], []>} : vector<16x4xbf16>, vector<8x4xbf16>, vector<16x8xf32> -> vector<16x8xf32>
    %cst_32 = arith.constant dense<0.000000e+00> : vector<16x8xf32>
    %75 = tpu.matmul %73, %65, %cst_32 {dimension_numbers = #tpu.dot_dimension_numbers<[1], [1], [0], [0], [0, 0, 1, 0], [], []>} : vector<16x4xbf16>, vector<8x4xbf16>, vector<16x8xf32> -> vector<16x8xf32>
    %76 = arith.addf %74, %75 : vector<16x8xf32>
    %77 = arith.addf %76, %16 : vector<16x8xf32>
    %cst_33 = arith.constant dense<0xFF800000> : vector<16xf32>
    %78 = vector.multi_reduction <maximumf>, %77, %cst_33 [1] : vector<16x8xf32> to vector<16xf32>
    %79 = vector.shape_cast %78 : vector<16xf32> to vector<16x1xf32>
    %80 = vector.broadcast %79 : vector<16x1xf32> to vector<16x8xf32>
    %81 = arith.subf %77, %80 : vector<16x8xf32>
    %82 = math.exp %81 : vector<16x8xf32>
    %cst_34 = arith.constant dense<0.000000e+00> : vector<16xf32>
    %83 = vector.multi_reduction <add>, %82, %cst_34 [1] : vector<16x8xf32> to vector<16xf32>
    %84 = vector.shape_cast %83 : vector<16xf32> to vector<16x1xf32>
    %85 = arith.truncf %82 : vector<16x8xf32> to vector<16x8xbf16>
    %cst_35 = arith.constant dense<0.000000e+00> : vector<16x8xf32>
    %86 = tpu.matmul %85, %67, %cst_35 {dimension_numbers = #tpu.dot_dimension_numbers<[1], [0], [0], [1], [0, 0, 1, 1], [], []>} : vector<16x8xbf16>, vector<8x8xbf16>, vector<16x8xf32> -> vector<16x8xf32>
    %87 = tpu.reciprocal %84 {approx = true} : vector<16x1xf32> -> vector<16x1xf32>
    %88 = vector.broadcast %87 : vector<16x1xf32> to vector<16x8xf32>
    %89 = arith.mulf %86, %88 : vector<16x8xf32>
    %90 = vector.extract_strided_slice %89 {offsets = [0, 0], sizes = [8, 8], strides = [1, 1]} : vector<16x8xf32> to vector<8x8xf32>
    %91 = arith.truncf %90 : vector<8x8xf32> to vector<8x8xbf16>
    %92 = vector.extract_strided_slice %20 {offsets = [0, 0], sizes = [8, 32], strides = [1, 1]} : vector<32x32xbf16> to vector<8x32xbf16>
    %cst_36 = arith.constant dense<0.000000e+00> : vector<8x32xf32>
    %93 = tpu.matmul %91, %92, %cst_36 {dimension_numbers = #tpu.dot_dimension_numbers<[1], [0], [0], [1], [0, 0, 1, 1], [], []>} : vector<8x8xbf16>, vector<8x32xbf16>, vector<8x32xf32> -> vector<8x32xf32>
    %94 = arith.addf %1, %93 : vector<8x32xf32>
    %95 = vector.extract_strided_slice %89 {offsets = [8, 0], sizes = [8, 8], strides = [1, 1]} : vector<16x8xf32> to vector<8x8xf32>
    %96 = arith.truncf %95 : vector<8x8xf32> to vector<8x8xbf16>
    %97 = vector.extract_strided_slice %20 {offsets = [8, 0], sizes = [8, 32], strides = [1, 1]} : vector<32x32xbf16> to vector<8x32xbf16>
    %cst_37 = arith.constant dense<0.000000e+00> : vector<8x32xf32>
    %98 = tpu.matmul %96, %97, %cst_37 {dimension_numbers = #tpu.dot_dimension_numbers<[1], [0], [0], [1], [0, 0, 1, 1], [], []>} : vector<8x8xbf16>, vector<8x32xbf16>, vector<8x32xf32> -> vector<8x32xf32>
    %99 = arith.addf %94, %98 : vector<8x32xf32>
    %100 = vector.extract_strided_slice %59 {offsets = [0, 4], sizes = [8, 4], strides = [1, 1]} : vector<8x8xbf16> to vector<8x4xbf16>
    %101 = vector.extract_strided_slice %63 {offsets = [0, 4], sizes = [8, 4], strides = [1, 1]} : vector<8x8xbf16> to vector<8x4xbf16>
    %102 = vector.extract_strided_slice %47 {offsets = [0, 8], sizes = [8, 8], strides = [1, 1]} : vector<8x16xf32> to vector<8x8xf32>
    %103 = arith.truncf %102 : vector<8x8xf32> to vector<8x8xbf16>
    %104 = vector.extract_strided_slice %51 {offsets = [0, 8], sizes = [8, 4], strides = [1, 1]} : vector<8x16xbf16> to vector<8x4xbf16>
    %105 = vector.extract_strided_slice %51 {offsets = [0, 12], sizes = [8, 4], strides = [1, 1]} : vector<8x16xbf16> to vector<8x4xbf16>
    %106 = tpu.concatenate %104, %105 in 0 : vector<8x4xbf16>, vector<8x4xbf16> -> vector<16x4xbf16>
    %107 = vector.extract_strided_slice %55 {offsets = [0, 8], sizes = [8, 4], strides = [1, 1]} : vector<8x16xbf16> to vector<8x4xbf16>
    %108 = vector.extract_strided_slice %55 {offsets = [0, 12], sizes = [8, 4], strides = [1, 1]} : vector<8x16xbf16> to vector<8x4xbf16>
    %109 = tpu.concatenate %107, %108 in 0 : vector<8x4xbf16>, vector<8x4xbf16> -> vector<16x4xbf16>
    %cst_38 = arith.constant dense<0.000000e+00> : vector<16x8xf32>
    %110 = tpu.matmul %106, %100, %cst_38 {dimension_numbers = #tpu.dot_dimension_numbers<[1], [1], [0], [0], [0, 0, 1, 0], [], []>} : vector<16x4xbf16>, vector<8x4xbf16>, vector<16x8xf32> -> vector<16x8xf32>
    %cst_39 = arith.constant dense<0.000000e+00> : vector<16x8xf32>
    %111 = tpu.matmul %109, %101, %cst_39 {dimension_numbers = #tpu.dot_dimension_numbers<[1], [1], [0], [0], [0, 0, 1, 0], [], []>} : vector<16x4xbf16>, vector<8x4xbf16>, vector<16x8xf32> -> vector<16x8xf32>
    %112 = arith.addf %110, %111 : vector<16x8xf32>
    %113 = arith.addf %112, %16 : vector<16x8xf32>
    %cst_40 = arith.constant dense<0xFF800000> : vector<16xf32>
    %114 = vector.multi_reduction <maximumf>, %113, %cst_40 [1] : vector<16x8xf32> to vector<16xf32>
    %115 = vector.shape_cast %114 : vector<16xf32> to vector<16x1xf32>
    %116 = vector.broadcast %115 : vector<16x1xf32> to vector<16x8xf32>
    %117 = arith.subf %113, %116 : vector<16x8xf32>
    %118 = math.exp %117 : vector<16x8xf32>
    %cst_41 = arith.constant dense<0.000000e+00> : vector<16xf32>
    %119 = vector.multi_reduction <add>, %118, %cst_41 [1] : vector<16x8xf32> to vector<16xf32>
    %120 = vector.shape_cast %119 : vector<16xf32> to vector<16x1xf32>
    %121 = arith.truncf %118 : vector<16x8xf32> to vector<16x8xbf16>
    %cst_42 = arith.constant dense<0.000000e+00> : vector<16x8xf32>
    %122 = tpu.matmul %121, %103, %cst_42 {dimension_numbers = #tpu.dot_dimension_numbers<[1], [0], [0], [1], [0, 0, 1, 1], [], []>} : vector<16x8xbf16>, vector<8x8xbf16>, vector<16x8xf32> -> vector<16x8xf32>
    %123 = tpu.reciprocal %120 {approx = true} : vector<16x1xf32> -> vector<16x1xf32>
    %124 = vector.broadcast %123 : vector<16x1xf32> to vector<16x8xf32>
    %125 = arith.mulf %122, %124 : vector<16x8xf32>
    %126 = vector.extract_strided_slice %125 {offsets = [0, 0], sizes = [8, 8], strides = [1, 1]} : vector<16x8xf32> to vector<8x8xf32>
    %127 = arith.truncf %126 : vector<8x8xf32> to vector<8x8xbf16>
    %128 = vector.extract_strided_slice %20 {offsets = [16, 0], sizes = [8, 32], strides = [1, 1]} : vector<32x32xbf16> to vector<8x32xbf16>
    %cst_43 = arith.constant dense<0.000000e+00> : vector<8x32xf32>
    %129 = tpu.matmul %127, %128, %cst_43 {dimension_numbers = #tpu.dot_dimension_numbers<[1], [0], [0], [1], [0, 0, 1, 1], [], []>} : vector<8x8xbf16>, vector<8x32xbf16>, vector<8x32xf32> -> vector<8x32xf32>
    %130 = arith.addf %99, %129 : vector<8x32xf32>
    %131 = vector.extract_strided_slice %125 {offsets = [8, 0], sizes = [8, 8], strides = [1, 1]} : vector<16x8xf32> to vector<8x8xf32>
    %132 = arith.truncf %131 : vector<8x8xf32> to vector<8x8xbf16>
    %133 = vector.extract_strided_slice %20 {offsets = [24, 0], sizes = [8, 32], strides = [1, 1]} : vector<32x32xbf16> to vector<8x32xbf16>
    %cst_44 = arith.constant dense<0.000000e+00> : vector<8x32xf32>
    %134 = tpu.matmul %132, %133, %cst_44 {dimension_numbers = #tpu.dot_dimension_numbers<[1], [0], [0], [1], [0, 0, 1, 1], [], []>} : vector<8x8xbf16>, vector<8x32xbf16>, vector<8x32xf32> -> vector<8x32xf32>
    %135 = arith.addf %130, %134 : vector<8x32xf32>
    %136 = arith.mulf %135, %135 : vector<8x32xf32>
    %cst_45 = arith.constant dense<0.000000e+00> : vector<8xf32>
    %137 = vector.multi_reduction <add>, %136, %cst_45 [1] : vector<8x32xf32> to vector<8xf32>
    %138 = vector.shape_cast %137 : vector<8xf32> to vector<8x1xf32>
    %cst_46 = arith.constant 3.200000e+01 : f32
    %139 = vector.broadcast %cst_46 : f32 to vector<8x1xf32>
    %140 = arith.divf %138, %139 : vector<8x1xf32>
    %cst_47 = arith.constant 9.99999997E-7 : f32
    %141 = vector.broadcast %cst_47 : f32 to vector<8x1xf32>
    %142 = arith.addf %140, %141 : vector<8x1xf32>
    %143 = math.rsqrt %142 : vector<8x1xf32>
    %144 = vector.broadcast %143 : vector<8x1xf32> to vector<8x32xf32>
    %145 = arith.mulf %135, %144 : vector<8x32xf32>
    %146 = vector.broadcast %28 : vector<1x32xf32> to vector<8x32xf32>
    %147 = arith.mulf %145, %146 : vector<8x32xf32>
    %148 = arith.truncf %147 : vector<8x32xf32> to vector<8x32xbf16>
    %cst_48 = arith.constant dense<0.000000e+00> : vector<8x128xf32>
    %149 = tpu.matmul %148, %22, %cst_48 {dimension_numbers = #tpu.dot_dimension_numbers<[1], [0], [0], [1], [0, 0, 1, 1], [], []>} : vector<8x32xbf16>, vector<32x128xbf16>, vector<8x128xf32> -> vector<8x128xf32>
    %150 = vector.extract_strided_slice %149 {offsets = [0, 0], sizes = [8, 64], strides = [1, 1]} : vector<8x128xf32> to vector<8x64xf32>
    %151 = vector.extract_strided_slice %149 {offsets = [0, 64], sizes = [8, 64], strides = [1, 1]} : vector<8x128xf32> to vector<8x64xf32>
    %cst_49 = arith.constant 5.000000e-01 : f32
    %152 = vector.broadcast %cst_49 : f32 to vector<8x64xf32>
    %153 = arith.mulf %152, %150 : vector<8x64xf32>
    %cst_50 = arith.constant 4.471500e-02 : f32
    %154 = vector.broadcast %cst_50 : f32 to vector<8x64xf32>
    %155 = arith.mulf %154, %150 : vector<8x64xf32>
    %156 = arith.mulf %155, %150 : vector<8x64xf32>
    %157 = arith.mulf %156, %150 : vector<8x64xf32>
    %158 = arith.addf %150, %157 : vector<8x64xf32>
    %cst_51 = arith.constant 0.797884583 : f32
    %159 = vector.broadcast %cst_51 : f32 to vector<8x64xf32>
    %160 = arith.mulf %159, %158 : vector<8x64xf32>
    %161 = math.tanh %160 : vector<8x64xf32>
    %cst_52 = arith.constant 1.000000e+00 : f32
    %162 = vector.broadcast %cst_52 : f32 to vector<8x64xf32>
    %163 = arith.addf %162, %161 : vector<8x64xf32>
    %164 = arith.mulf %153, %163 : vector<8x64xf32>
    %165 = arith.mulf %164, %151 : vector<8x64xf32>
    %166 = arith.truncf %165 : vector<8x64xf32> to vector<8x64xbf16>
    %cst_53 = arith.constant dense<0.000000e+00> : vector<8x32xf32>
    %167 = tpu.matmul %166, %24, %cst_53 {dimension_numbers = #tpu.dot_dimension_numbers<[1], [0], [0], [1], [0, 0, 1, 1], [], []>} : vector<8x64xbf16>, vector<64x32xbf16>, vector<8x32xf32> -> vector<8x32xf32>
    %168 = arith.addf %135, %167 : vector<8x32xf32>
    %c1 = arith.constant 1 : index
    %c0_54 = arith.constant 0 : index
    %c0_55 = arith.constant 0 : index
    %169 = vector.load %arg4[%c1, %c0_54, %c0_55] : memref<2x32x64xbf16, #tpu.memory_space<vmem>>, vector<1x32x64xbf16>
    %170 = vector.shape_cast %169 : vector<1x32x64xbf16> to vector<32x64xbf16>
    %c1_56 = arith.constant 1 : index
    %c0_57 = arith.constant 0 : index
    %c0_58 = arith.constant 0 : index
    %171 = vector.load %arg5[%c1_56, %c0_57, %c0_58] : memref<2x32x32xbf16, #tpu.memory_space<vmem>>, vector<1x32x32xbf16>
    %172 = vector.shape_cast %171 : vector<1x32x32xbf16> to vector<32x32xbf16>
    %c1_59 = arith.constant 1 : index
    %c0_60 = arith.constant 0 : index
    %c0_61 = arith.constant 0 : index
    %173 = vector.load %arg6[%c1_59, %c0_60, %c0_61] : memref<2x32x128xbf16, #tpu.memory_space<vmem>>, vector<1x32x128xbf16>
    %174 = vector.shape_cast %173 : vector<1x32x128xbf16> to vector<32x128xbf16>
    %c1_62 = arith.constant 1 : index
    %c0_63 = arith.constant 0 : index
    %c0_64 = arith.constant 0 : index
    %175 = vector.load %arg7[%c1_62, %c0_63, %c0_64] : memref<2x64x32xbf16, #tpu.memory_space<vmem>>, vector<1x64x32xbf16>
    %176 = vector.shape_cast %175 : vector<1x64x32xbf16> to vector<64x32xbf16>
    %c1_65 = arith.constant 1 : index
    %c0_66 = arith.constant 0 : index
    %c0_67 = arith.constant 0 : index
    %177 = vector.load %arg8[%c1_65, %c0_66, %c0_67] : memref<2x1x32xf32, #tpu.memory_space<vmem>>, vector<1x1x32xf32>
    %178 = vector.shape_cast %177 : vector<1x1x32xf32> to vector<1x32xf32>
    %c1_68 = arith.constant 1 : index
    %c0_69 = arith.constant 0 : index
    %c0_70 = arith.constant 0 : index
    %179 = vector.load %arg9[%c1_68, %c0_69, %c0_70] : memref<2x1x32xf32, #tpu.memory_space<vmem>>, vector<1x1x32xf32>
    %180 = vector.shape_cast %179 : vector<1x1x32xf32> to vector<1x32xf32>
    %181 = arith.mulf %168, %168 : vector<8x32xf32>
    %cst_71 = arith.constant dense<0.000000e+00> : vector<8xf32>
    %182 = vector.multi_reduction <add>, %181, %cst_71 [1] : vector<8x32xf32> to vector<8xf32>
    %183 = vector.shape_cast %182 : vector<8xf32> to vector<8x1xf32>
    %cst_72 = arith.constant 3.200000e+01 : f32
    %184 = vector.broadcast %cst_72 : f32 to vector<8x1xf32>
    %185 = arith.divf %183, %184 : vector<8x1xf32>
    %cst_73 = arith.constant 9.99999997E-7 : f32
    %186 = vector.broadcast %cst_73 : f32 to vector<8x1xf32>
    %187 = arith.addf %185, %186 : vector<8x1xf32>
    %188 = math.rsqrt %187 : vector<8x1xf32>
    %189 = vector.broadcast %188 : vector<8x1xf32> to vector<8x32xf32>
    %190 = arith.mulf %168, %189 : vector<8x32xf32>
    %191 = vector.broadcast %178 : vector<1x32xf32> to vector<8x32xf32>
    %192 = arith.mulf %190, %191 : vector<8x32xf32>
    %193 = arith.truncf %192 : vector<8x32xf32> to vector<8x32xbf16>
    %cst_74 = arith.constant dense<0.000000e+00> : vector<8x64xf32>
    %194 = tpu.matmul %193, %170, %cst_74 {dimension_numbers = #tpu.dot_dimension_numbers<[1], [0], [0], [1], [0, 0, 1, 1], [], []>} : vector<8x32xbf16>, vector<32x64xbf16>, vector<8x64xf32> -> vector<8x64xf32>
    %195 = vector.extract_strided_slice %194 {offsets = [0, 0], sizes = [8, 16], strides = [1, 1]} : vector<8x64xf32> to vector<8x16xf32>
    %196 = vector.extract_strided_slice %194 {offsets = [0, 16], sizes = [8, 16], strides = [1, 1]} : vector<8x64xf32> to vector<8x16xf32>
    %197 = vector.extract_strided_slice %194 {offsets = [0, 32], sizes = [8, 8], strides = [1, 1]} : vector<8x64xf32> to vector<8x8xf32>
    %198 = vector.extract_strided_slice %194 {offsets = [0, 40], sizes = [8, 8], strides = [1, 1]} : vector<8x64xf32> to vector<8x8xf32>
    %199 = vector.extract_strided_slice %194 {offsets = [0, 48], sizes = [8, 16], strides = [1, 1]} : vector<8x64xf32> to vector<8x16xf32>
    %200 = arith.mulf %195, %5 : vector<8x16xf32>
    %201 = arith.mulf %196, %7 : vector<8x16xf32>
    %202 = arith.subf %200, %201 : vector<8x16xf32>
    %203 = arith.truncf %202 : vector<8x16xf32> to vector<8x16xbf16>
    %204 = arith.mulf %195, %7 : vector<8x16xf32>
    %205 = arith.mulf %196, %5 : vector<8x16xf32>
    %206 = arith.addf %204, %205 : vector<8x16xf32>
    %207 = arith.truncf %206 : vector<8x16xf32> to vector<8x16xbf16>
    %208 = arith.mulf %197, %8 : vector<8x8xf32>
    %209 = arith.mulf %198, %9 : vector<8x8xf32>
    %210 = arith.subf %208, %209 : vector<8x8xf32>
    %211 = arith.truncf %210 : vector<8x8xf32> to vector<8x8xbf16>
    %212 = arith.mulf %197, %9 : vector<8x8xf32>
    %213 = arith.mulf %198, %8 : vector<8x8xf32>
    %214 = arith.addf %212, %213 : vector<8x8xf32>
    %215 = arith.truncf %214 : vector<8x8xf32> to vector<8x8xbf16>
    %216 = vector.extract_strided_slice %211 {offsets = [0, 0], sizes = [8, 4], strides = [1, 1]} : vector<8x8xbf16> to vector<8x4xbf16>
    %217 = vector.extract_strided_slice %215 {offsets = [0, 0], sizes = [8, 4], strides = [1, 1]} : vector<8x8xbf16> to vector<8x4xbf16>
    %218 = vector.extract_strided_slice %199 {offsets = [0, 0], sizes = [8, 8], strides = [1, 1]} : vector<8x16xf32> to vector<8x8xf32>
    %219 = arith.truncf %218 : vector<8x8xf32> to vector<8x8xbf16>
    %220 = vector.extract_strided_slice %203 {offsets = [0, 0], sizes = [8, 4], strides = [1, 1]} : vector<8x16xbf16> to vector<8x4xbf16>
    %221 = vector.extract_strided_slice %203 {offsets = [0, 4], sizes = [8, 4], strides = [1, 1]} : vector<8x16xbf16> to vector<8x4xbf16>
    %222 = tpu.concatenate %220, %221 in 0 : vector<8x4xbf16>, vector<8x4xbf16> -> vector<16x4xbf16>
    %223 = vector.extract_strided_slice %207 {offsets = [0, 0], sizes = [8, 4], strides = [1, 1]} : vector<8x16xbf16> to vector<8x4xbf16>
    %224 = vector.extract_strided_slice %207 {offsets = [0, 4], sizes = [8, 4], strides = [1, 1]} : vector<8x16xbf16> to vector<8x4xbf16>
    %225 = tpu.concatenate %223, %224 in 0 : vector<8x4xbf16>, vector<8x4xbf16> -> vector<16x4xbf16>
    %cst_75 = arith.constant dense<0.000000e+00> : vector<16x8xf32>
    %226 = tpu.matmul %222, %216, %cst_75 {dimension_numbers = #tpu.dot_dimension_numbers<[1], [1], [0], [0], [0, 0, 1, 0], [], []>} : vector<16x4xbf16>, vector<8x4xbf16>, vector<16x8xf32> -> vector<16x8xf32>
    %cst_76 = arith.constant dense<0.000000e+00> : vector<16x8xf32>
    %227 = tpu.matmul %225, %217, %cst_76 {dimension_numbers = #tpu.dot_dimension_numbers<[1], [1], [0], [0], [0, 0, 1, 0], [], []>} : vector<16x4xbf16>, vector<8x4xbf16>, vector<16x8xf32> -> vector<16x8xf32>
    %228 = arith.addf %226, %227 : vector<16x8xf32>
    %229 = arith.addf %228, %16 : vector<16x8xf32>
    %cst_77 = arith.constant dense<0xFF800000> : vector<16xf32>
    %230 = vector.multi_reduction <maximumf>, %229, %cst_77 [1] : vector<16x8xf32> to vector<16xf32>
    %231 = vector.shape_cast %230 : vector<16xf32> to vector<16x1xf32>
    %232 = vector.broadcast %231 : vector<16x1xf32> to vector<16x8xf32>
    %233 = arith.subf %229, %232 : vector<16x8xf32>
    %234 = math.exp %233 : vector<16x8xf32>
    %cst_78 = arith.constant dense<0.000000e+00> : vector<16xf32>
    %235 = vector.multi_reduction <add>, %234, %cst_78 [1] : vector<16x8xf32> to vector<16xf32>
    %236 = vector.shape_cast %235 : vector<16xf32> to vector<16x1xf32>
    %237 = arith.truncf %234 : vector<16x8xf32> to vector<16x8xbf16>
    %cst_79 = arith.constant dense<0.000000e+00> : vector<16x8xf32>
    %238 = tpu.matmul %237, %219, %cst_79 {dimension_numbers = #tpu.dot_dimension_numbers<[1], [0], [0], [1], [0, 0, 1, 1], [], []>} : vector<16x8xbf16>, vector<8x8xbf16>, vector<16x8xf32> -> vector<16x8xf32>
    %239 = tpu.reciprocal %236 {approx = true} : vector<16x1xf32> -> vector<16x1xf32>
    %240 = vector.broadcast %239 : vector<16x1xf32> to vector<16x8xf32>
    %241 = arith.mulf %238, %240 : vector<16x8xf32>
    %242 = vector.extract_strided_slice %241 {offsets = [0, 0], sizes = [8, 8], strides = [1, 1]} : vector<16x8xf32> to vector<8x8xf32>
    %243 = arith.truncf %242 : vector<8x8xf32> to vector<8x8xbf16>
    %244 = vector.extract_strided_slice %172 {offsets = [0, 0], sizes = [8, 32], strides = [1, 1]} : vector<32x32xbf16> to vector<8x32xbf16>
    %cst_80 = arith.constant dense<0.000000e+00> : vector<8x32xf32>
    %245 = tpu.matmul %243, %244, %cst_80 {dimension_numbers = #tpu.dot_dimension_numbers<[1], [0], [0], [1], [0, 0, 1, 1], [], []>} : vector<8x8xbf16>, vector<8x32xbf16>, vector<8x32xf32> -> vector<8x32xf32>
    %246 = arith.addf %168, %245 : vector<8x32xf32>
    %247 = vector.extract_strided_slice %241 {offsets = [8, 0], sizes = [8, 8], strides = [1, 1]} : vector<16x8xf32> to vector<8x8xf32>
    %248 = arith.truncf %247 : vector<8x8xf32> to vector<8x8xbf16>
    %249 = vector.extract_strided_slice %172 {offsets = [8, 0], sizes = [8, 32], strides = [1, 1]} : vector<32x32xbf16> to vector<8x32xbf16>
    %cst_81 = arith.constant dense<0.000000e+00> : vector<8x32xf32>
    %250 = tpu.matmul %248, %249, %cst_81 {dimension_numbers = #tpu.dot_dimension_numbers<[1], [0], [0], [1], [0, 0, 1, 1], [], []>} : vector<8x8xbf16>, vector<8x32xbf16>, vector<8x32xf32> -> vector<8x32xf32>
    %251 = arith.addf %246, %250 : vector<8x32xf32>
    %252 = vector.extract_strided_slice %211 {offsets = [0, 4], sizes = [8, 4], strides = [1, 1]} : vector<8x8xbf16> to vector<8x4xbf16>
    %253 = vector.extract_strided_slice %215 {offsets = [0, 4], sizes = [8, 4], strides = [1, 1]} : vector<8x8xbf16> to vector<8x4xbf16>
    %254 = vector.extract_strided_slice %199 {offsets = [0, 8], sizes = [8, 8], strides = [1, 1]} : vector<8x16xf32> to vector<8x8xf32>
    %255 = arith.truncf %254 : vector<8x8xf32> to vector<8x8xbf16>
    %256 = vector.extract_strided_slice %203 {offsets = [0, 8], sizes = [8, 4], strides = [1, 1]} : vector<8x16xbf16> to vector<8x4xbf16>
    %257 = vector.extract_strided_slice %203 {offsets = [0, 12], sizes = [8, 4], strides = [1, 1]} : vector<8x16xbf16> to vector<8x4xbf16>
    %258 = tpu.concatenate %256, %257 in 0 : vector<8x4xbf16>, vector<8x4xbf16> -> vector<16x4xbf16>
    %259 = vector.extract_strided_slice %207 {offsets = [0, 8], sizes = [8, 4], strides = [1, 1]} : vector<8x16xbf16> to vector<8x4xbf16>
    %260 = vector.extract_strided_slice %207 {offsets = [0, 12], sizes = [8, 4], strides = [1, 1]} : vector<8x16xbf16> to vector<8x4xbf16>
    %261 = tpu.concatenate %259, %260 in 0 : vector<8x4xbf16>, vector<8x4xbf16> -> vector<16x4xbf16>
    %cst_82 = arith.constant dense<0.000000e+00> : vector<16x8xf32>
    %262 = tpu.matmul %258, %252, %cst_82 {dimension_numbers = #tpu.dot_dimension_numbers<[1], [1], [0], [0], [0, 0, 1, 0], [], []>} : vector<16x4xbf16>, vector<8x4xbf16>, vector<16x8xf32> -> vector<16x8xf32>
    %cst_83 = arith.constant dense<0.000000e+00> : vector<16x8xf32>
    %263 = tpu.matmul %261, %253, %cst_83 {dimension_numbers = #tpu.dot_dimension_numbers<[1], [1], [0], [0], [0, 0, 1, 0], [], []>} : vector<16x4xbf16>, vector<8x4xbf16>, vector<16x8xf32> -> vector<16x8xf32>
    %264 = arith.addf %262, %263 : vector<16x8xf32>
    %265 = arith.addf %264, %16 : vector<16x8xf32>
    %cst_84 = arith.constant dense<0xFF800000> : vector<16xf32>
    %266 = vector.multi_reduction <maximumf>, %265, %cst_84 [1] : vector<16x8xf32> to vector<16xf32>
    %267 = vector.shape_cast %266 : vector<16xf32> to vector<16x1xf32>
    %268 = vector.broadcast %267 : vector<16x1xf32> to vector<16x8xf32>
    %269 = arith.subf %265, %268 : vector<16x8xf32>
    %270 = math.exp %269 : vector<16x8xf32>
    %cst_85 = arith.constant dense<0.000000e+00> : vector<16xf32>
    %271 = vector.multi_reduction <add>, %270, %cst_85 [1] : vector<16x8xf32> to vector<16xf32>
    %272 = vector.shape_cast %271 : vector<16xf32> to vector<16x1xf32>
    %273 = arith.truncf %270 : vector<16x8xf32> to vector<16x8xbf16>
    %cst_86 = arith.constant dense<0.000000e+00> : vector<16x8xf32>
    %274 = tpu.matmul %273, %255, %cst_86 {dimension_numbers = #tpu.dot_dimension_numbers<[1], [0], [0], [1], [0, 0, 1, 1], [], []>} : vector<16x8xbf16>, vector<8x8xbf16>, vector<16x8xf32> -> vector<16x8xf32>
    %275 = tpu.reciprocal %272 {approx = true} : vector<16x1xf32> -> vector<16x1xf32>
    %276 = vector.broadcast %275 : vector<16x1xf32> to vector<16x8xf32>
    %277 = arith.mulf %274, %276 : vector<16x8xf32>
    %278 = vector.extract_strided_slice %277 {offsets = [0, 0], sizes = [8, 8], strides = [1, 1]} : vector<16x8xf32> to vector<8x8xf32>
    %279 = arith.truncf %278 : vector<8x8xf32> to vector<8x8xbf16>
    %280 = vector.extract_strided_slice %172 {offsets = [16, 0], sizes = [8, 32], strides = [1, 1]} : vector<32x32xbf16> to vector<8x32xbf16>
    %cst_87 = arith.constant dense<0.000000e+00> : vector<8x32xf32>
    %281 = tpu.matmul %279, %280, %cst_87 {dimension_numbers = #tpu.dot_dimension_numbers<[1], [0], [0], [1], [0, 0, 1, 1], [], []>} : vector<8x8xbf16>, vector<8x32xbf16>, vector<8x32xf32> -> vector<8x32xf32>
    %282 = arith.addf %251, %281 : vector<8x32xf32>
    %283 = vector.extract_strided_slice %277 {offsets = [8, 0], sizes = [8, 8], strides = [1, 1]} : vector<16x8xf32> to vector<8x8xf32>
    %284 = arith.truncf %283 : vector<8x8xf32> to vector<8x8xbf16>
    %285 = vector.extract_strided_slice %172 {offsets = [24, 0], sizes = [8, 32], strides = [1, 1]} : vector<32x32xbf16> to vector<8x32xbf16>
    %cst_88 = arith.constant dense<0.000000e+00> : vector<8x32xf32>
    %286 = tpu.matmul %284, %285, %cst_88 {dimension_numbers = #tpu.dot_dimension_numbers<[1], [0], [0], [1], [0, 0, 1, 1], [], []>} : vector<8x8xbf16>, vector<8x32xbf16>, vector<8x32xf32> -> vector<8x32xf32>
    %287 = arith.addf %282, %286 : vector<8x32xf32>
    %288 = arith.mulf %287, %287 : vector<8x32xf32>
    %cst_89 = arith.constant dense<0.000000e+00> : vector<8xf32>
    %289 = vector.multi_reduction <add>, %288, %cst_89 [1] : vector<8x32xf32> to vector<8xf32>
    %290 = vector.shape_cast %289 : vector<8xf32> to vector<8x1xf32>
    %cst_90 = arith.constant 3.200000e+01 : f32
    %291 = vector.broadcast %cst_90 : f32 to vector<8x1xf32>
    %292 = arith.divf %290, %291 : vector<8x1xf32>
    %cst_91 = arith.constant 9.99999997E-7 : f32
    %293 = vector.broadcast %cst_91 : f32 to vector<8x1xf32>
    %294 = arith.addf %292, %293 : vector<8x1xf32>
    %295 = math.rsqrt %294 : vector<8x1xf32>
    %296 = vector.broadcast %295 : vector<8x1xf32> to vector<8x32xf32>
    %297 = arith.mulf %287, %296 : vector<8x32xf32>
    %298 = vector.broadcast %180 : vector<1x32xf32> to vector<8x32xf32>
    %299 = arith.mulf %297, %298 : vector<8x32xf32>
    %300 = arith.truncf %299 : vector<8x32xf32> to vector<8x32xbf16>
    %cst_92 = arith.constant dense<0.000000e+00> : vector<8x128xf32>
    %301 = tpu.matmul %300, %174, %cst_92 {dimension_numbers = #tpu.dot_dimension_numbers<[1], [0], [0], [1], [0, 0, 1, 1], [], []>} : vector<8x32xbf16>, vector<32x128xbf16>, vector<8x128xf32> -> vector<8x128xf32>
    %302 = vector.extract_strided_slice %301 {offsets = [0, 0], sizes = [8, 64], strides = [1, 1]} : vector<8x128xf32> to vector<8x64xf32>
    %303 = vector.extract_strided_slice %301 {offsets = [0, 64], sizes = [8, 64], strides = [1, 1]} : vector<8x128xf32> to vector<8x64xf32>
    %cst_93 = arith.constant 5.000000e-01 : f32
    %304 = vector.broadcast %cst_93 : f32 to vector<8x64xf32>
    %305 = arith.mulf %304, %302 : vector<8x64xf32>
    %cst_94 = arith.constant 4.471500e-02 : f32
    %306 = vector.broadcast %cst_94 : f32 to vector<8x64xf32>
    %307 = arith.mulf %306, %302 : vector<8x64xf32>
    %308 = arith.mulf %307, %302 : vector<8x64xf32>
    %309 = arith.mulf %308, %302 : vector<8x64xf32>
    %310 = arith.addf %302, %309 : vector<8x64xf32>
    %cst_95 = arith.constant 0.797884583 : f32
    %311 = vector.broadcast %cst_95 : f32 to vector<8x64xf32>
    %312 = arith.mulf %311, %310 : vector<8x64xf32>
    %313 = math.tanh %312 : vector<8x64xf32>
    %cst_96 = arith.constant 1.000000e+00 : f32
    %314 = vector.broadcast %cst_96 : f32 to vector<8x64xf32>
    %315 = arith.addf %314, %313 : vector<8x64xf32>
    %316 = arith.mulf %305, %315 : vector<8x64xf32>
    %317 = arith.mulf %316, %303 : vector<8x64xf32>
    %318 = arith.truncf %317 : vector<8x64xf32> to vector<8x64xbf16>
    %cst_97 = arith.constant dense<0.000000e+00> : vector<8x32xf32>
    %319 = tpu.matmul %318, %176, %cst_97 {dimension_numbers = #tpu.dot_dimension_numbers<[1], [0], [0], [1], [0, 0, 1, 1], [], []>} : vector<8x64xbf16>, vector<64x32xbf16>, vector<8x32xf32> -> vector<8x32xf32>
    %320 = arith.addf %287, %319 : vector<8x32xf32>
    %c0_98 = arith.constant 0 : index
    %c0_99 = arith.constant 0 : index
    %321 = vector.load %arg10[%c0_98, %c0_99] : memref<1x32xf32, #tpu.memory_space<vmem>>, vector<1x32xf32>
    %322 = arith.mulf %320, %320 : vector<8x32xf32>
    %cst_100 = arith.constant dense<0.000000e+00> : vector<8xf32>
    %323 = vector.multi_reduction <add>, %322, %cst_100 [1] : vector<8x32xf32> to vector<8xf32>
    %324 = vector.shape_cast %323 : vector<8xf32> to vector<8x1xf32>
    %cst_101 = arith.constant 3.200000e+01 : f32
    %325 = vector.broadcast %cst_101 : f32 to vector<8x1xf32>
    %326 = arith.divf %324, %325 : vector<8x1xf32>
    %cst_102 = arith.constant 9.99999997E-7 : f32
    %327 = vector.broadcast %cst_102 : f32 to vector<8x1xf32>
    %328 = arith.addf %326, %327 : vector<8x1xf32>
    %329 = math.rsqrt %328 : vector<8x1xf32>
    %330 = vector.broadcast %329 : vector<8x1xf32> to vector<8x32xf32>
    %331 = arith.mulf %320, %330 : vector<8x32xf32>
    %332 = vector.broadcast %321 : vector<1x32xf32> to vector<8x32xf32>
    %333 = arith.mulf %331, %332 : vector<8x32xf32>
    %334 = vector.extract_strided_slice %333 {offsets = [0, 0], sizes = [1, 32], strides = [1, 1]} : vector<8x32xf32> to vector<1x32xf32>
    %335 = vector.extract_strided_slice %333 {offsets = [1, 0], sizes = [1, 32], strides = [1, 1]} : vector<8x32xf32> to vector<1x32xf32>
    %336 = vector.extract_strided_slice %333 {offsets = [2, 0], sizes = [1, 32], strides = [1, 1]} : vector<8x32xf32> to vector<1x32xf32>
    %337 = vector.extract_strided_slice %333 {offsets = [3, 0], sizes = [1, 32], strides = [1, 1]} : vector<8x32xf32> to vector<1x32xf32>
    %338 = vector.extract_strided_slice %333 {offsets = [4, 0], sizes = [1, 32], strides = [1, 1]} : vector<8x32xf32> to vector<1x32xf32>
    %339 = vector.extract_strided_slice %333 {offsets = [5, 0], sizes = [1, 32], strides = [1, 1]} : vector<8x32xf32> to vector<1x32xf32>
    %340 = vector.extract_strided_slice %333 {offsets = [6, 0], sizes = [1, 32], strides = [1, 1]} : vector<8x32xf32> to vector<1x32xf32>
    %341 = vector.extract_strided_slice %333 {offsets = [7, 0], sizes = [1, 32], strides = [1, 1]} : vector<8x32xf32> to vector<1x32xf32>
    %342 = tpu.concatenate %334, %335, %336, %337, %338, %339, %340, %341 in 1 : vector<1x32xf32>, vector<1x32xf32>, vector<1x32xf32>, vector<1x32xf32>, vector<1x32xf32>, vector<1x32xf32>, vector<1x32xf32>, vector<1x32xf32> -> vector<1x256xf32>
    %c0_103 = arith.constant 0 : index
    %c0_104 = arith.constant 0 : index
    %c0_105 = arith.constant 0 : index
    %343 = vector.load %arg11[%c0_103, %c0_104, %c0_105] : memref<1x1x256xf32, #tpu.memory_space<vmem>>, vector<1x1x256xf32>
    %344 = vector.shape_cast %343 : vector<1x1x256xf32> to vector<1x256xf32>
    %345 = vector.shape_cast %342 : vector<1x256xf32> to vector<1x1x256xf32>
    tpu.vector_store %arg11[%c0_103, %c0_104, %c0_105], %345 {strides = array<i32>} : memref<1x1x256xf32, #tpu.memory_space<vmem>>, vector<1x1x256xf32>,
    return
  }
  func.func @transform_0(%arg0: i32) -> (i32, i32, i32) {
    %c0_i32 = arith.constant 0 : i32
    %c0_i32_0 = arith.constant 0 : i32
    %c0_i32_1 = arith.constant 0 : i32
    return %arg0, %c0_i32, %c0_i32_0 : i32, i32, i32
  }
  func.func @transform_1(%arg0: i32) -> (i32, i32) {
    %c0_i32 = arith.constant 0 : i32
    %c0_i32_0 = arith.constant 0 : i32
    %c0_i32_1 = arith.constant 0 : i32
    return %c0_i32, %c0_i32_0 : i32, i32
  }
  func.func @transform_2(%arg0: i32) -> (i32, i32) {
    %c0_i32 = arith.constant 0 : i32
    %c0_i32_0 = arith.constant 0 : i32
    %c0_i32_1 = arith.constant 0 : i32
    return %c0_i32, %c0_i32_0 : i32, i32
  }
  func.func @transform_3(%arg0: i32) -> (i32, i32, i32) {
    %c0_i32 = arith.constant 0 : i32
    %c0_i32_0 = arith.constant 0 : i32
    %c0_i32_1 = arith.constant 0 : i32
    %c0_i32_2 = arith.constant 0 : i32
    return %c0_i32, %c0_i32_0, %c0_i32_1 : i32, i32, i32
  }
  func.func @transform_4(%arg0: i32) -> (i32, i32, i32) {
    %c0_i32 = arith.constant 0 : i32
    %c0_i32_0 = arith.constant 0 : i32
    %c0_i32_1 = arith.constant 0 : i32
    %c0_i32_2 = arith.constant 0 : i32
    return %c0_i32, %c0_i32_0, %c0_i32_1 : i32, i32, i32
  }
  func.func @transform_5(%arg0: i32) -> (i32, i32, i32) {
    %c0_i32 = arith.constant 0 : i32
    %c0_i32_0 = arith.constant 0 : i32
    %c0_i32_1 = arith.constant 0 : i32
    %c0_i32_2 = arith.constant 0 : i32
    return %c0_i32, %c0_i32_0, %c0_i32_1 : i32, i32, i32
  }
  func.func @transform_6(%arg0: i32) -> (i32, i32, i32) {
    %c0_i32 = arith.constant 0 : i32
    %c0_i32_0 = arith.constant 0 : i32
    %c0_i32_1 = arith.constant 0 : i32
    %c0_i32_2 = arith.constant 0 : i32
    return %c0_i32, %c0_i32_0, %c0_i32_1 : i32, i32, i32
  }
  func.func @transform_7(%arg0: i32) -> (i32, i32, i32) {
    %c0_i32 = arith.constant 0 : i32
    %c0_i32_0 = arith.constant 0 : i32
    %c0_i32_1 = arith.constant 0 : i32
    %c0_i32_2 = arith.constant 0 : i32
    return %c0_i32, %c0_i32_0, %c0_i32_1 : i32, i32, i32
  }
  func.func @transform_8(%arg0: i32) -> (i32, i32, i32) {
    %c0_i32 = arith.constant 0 : i32
    %c0_i32_0 = arith.constant 0 : i32
    %c0_i32_1 = arith.constant 0 : i32
    %c0_i32_2 = arith.constant 0 : i32
    return %c0_i32, %c0_i32_0, %c0_i32_1 : i32, i32, i32
  }
  func.func @transform_9(%arg0: i32) -> (i32, i32) {
    %c0_i32 = arith.constant 0 : i32
    %c0_i32_0 = arith.constant 0 : i32
    %c0_i32_1 = arith.constant 0 : i32
    return %c0_i32, %c0_i32_0 : i32, i32
  }
  func.func @transform_10(%arg0: i32) -> (i32, i32, i32) {
    %c0_i32 = arith.constant 0 : i32
    %c0_i32_0 = arith.constant 0 : i32
    %c0_i32_1 = arith.constant 0 : i32
    return %arg0, %c0_i32, %c0_i32_0 : i32, i32, i32
  }
}

</mosaic_0001>

<llo_original>
// kernel: gemma_forward.1
$region0: #{gemma_forward.1}
  #allocation0 [shape = 'u32[]', space=smem, size = 0x4, offset = 0x4, fixed_abs, tag = 'smem constant byte address 0x4 - core index']
  #allocation1 [shape = 'u32[144,128]{1,0:T(1,128)}', space=vmem, size = 0x12000, scoped, tag = 'internal scratch']
  %s0 = inlined_call_operand.vmem [shape: f32[2,8,32], index: 0, kind: input, shape index: {}]
  %s1 = inlined_call_operand.vmem [shape: f32[8,16], index: 1, kind: input, shape index: {}]
  %s2 = inlined_call_operand.vmem [shape: f32[8,16], index: 2, kind: input, shape index: {}]
  %s3 = inlined_call_operand.vmem [shape: bf16[2,32,64], index: 3, kind: input, shape index: {}]
  %s4 = inlined_call_operand.vmem [shape: bf16[2,32,32], index: 4, kind: input, shape index: {}]
  %s5 = inlined_call_operand.vmem [shape: bf16[2,32,128], index: 5, kind: input, shape index: {}]
  %s6 = inlined_call_operand.vmem [shape: bf16[2,64,32], index: 6, kind: input, shape index: {}]
  %s7 = inlined_call_operand.vmem [shape: f32[2,1,32], index: 7, kind: input, shape index: {}]
  %s8 = inlined_call_operand.vmem [shape: f32[2,1,32], index: 8, kind: input, shape index: {}]
  %s9 = inlined_call_operand.vmem [shape: f32[1,32], index: 9, kind: input, shape index: {}]
  %s10 = inlined_call_operand.vmem [shape: f32[2,1,256], index: 10, kind: output, shape index: {}]
  %s11 = sld [smem:[#allocation0]]
  $region73: #{gemma_forward.1} parent=0
    _
  %s13 = ssub.s32 1, %s11
  %s14 = scalar_select 0, %s13, %s11
  loop: start=0, step=1, limit=4
  $region2: #{gemma_forward.1} parent=0 // loop_pre_header
    _
  $region3: #{gemma_forward.1} parent=0 // loop_header
    %s16 = sphi 0, %s20
    %p17 = scmp.ge.s32.totalorder %s16, 4
    %s26 = sphi 0, %s28
    %s29 = sphi 0, %s26
    %s30 = sphi 0, %s29
    %s46 = sphi 0, %s30
    %s50 = sphi 0, %s50
    %s52 = sphi 0, %s50
    %s53 = sphi 0, %s52
    %s67 = sphi 0, %s53
    %s71 = sphi 0, %s71
    %s73 = sphi 0, %s71
    %s74 = sphi 0, %s73
    %s88 = sphi 0, %s74
    %s92 = sphi 0, %s92
    %s94 = sphi 0, %s92
    %s95 = sphi 0, %s94
    %s109 = sphi 0, %s95
    %s113 = sphi 0, %s113
    %s115 = sphi 0, %s113
    %s116 = sphi 0, %s115
    %s130 = sphi 0, %s116
    %s134 = sphi 0, %s134
    %s136 = sphi 0, %s134
    %s137 = sphi 0, %s136
    %s151 = sphi 0, %s137
    %s155 = sphi 0, %s155
    %s157 = sphi 0, %s155
    %s158 = sphi 0, %s157
    %s172 = sphi 0, %s158
    %s176 = sphi 0, %s176
    %s178 = sphi 0, %s176
    %s179 = sphi 0, %s178
    %s193 = sphi 0, %s179
    %s197 = sphi 0, %s197
    %s199 = sphi 0, %s197
    %s200 = sphi 0, %s199
    %s214 = sphi 0, %s200
    %s218 = sphi 0, %s218
    %s220 = sphi 0, %s218
    %s221 = sphi 0, %s220
    %s235 = sphi 0, %s221
    %s241 = sphi 0, %s243
    %s244 = sphi 0, %s241
    %s245 = sphi 0, %s244
    %s261 = sphi 0, %s245
  $region4: #{gemma_forward.1} parent=0 // loop_header_branch
    %19 = sbr.rel (%p17) target = $region8
  $region5: #{gemma_forward.1} parent=0 // loop_body
    %s21 = ssub.s32 %s16, 1
    %s22 = ssub.s32 %s16, 2
    %s23 = sadd.s32 %s16, 1
    %s24 = ssub.s32 %s16, %s23
    %p25 = scmp.eq.s32.totalorder %s24, 0
    %s27 = sadd.s32 %s26, 1
    %s28 = scalar_select %p25, %s26, %s27
    %p31 = pneg %p25
    %p32 = scmp.eq.s32.totalorder %s16, 1
    %p33 = por %p31, %p32
    %p34 = scmp.ne.s32.totalorder %s26, %s29
    %p35 = scmp.eq.s32.totalorder %s16, 0
    %p36 = por %p34, %p35
    %p37 = scmp.ne.s32.totalorder %s26, %s29
    %p38 = scmp.eq.s32.totalorder %s21, 1
    %p39 = por %p37, %p38
    %p40 = scmp.ne.s32.totalorder %s29, %s30
    %p41 = scmp.eq.s32.totalorder %s21, 0
    %p42 = por %p40, %p41
    %p43 = scmp.ne.s32.totalorder %s29, %s30
    %p44 = scmp.eq.s32.totalorder %s22, 1
    %p45 = por %p43, %p44
    %p47 = scmp.ne.s32.totalorder %s30, %s46
    %p48 = scmp.eq.s32.totalorder %s22, 0
    %p49 = por %p47, %p48
    %s51 = sadd.s32 %s50, 1
    %p54 = scmp.eq.s32.totalorder %s16, 1
    %p55 = scmp.ne.s32.totalorder %s50, %s52
    %p56 = scmp.eq.s32.totalorder %s16, 0
    %p57 = por %p55, %p56
    %p58 = scmp.ne.s32.totalorder %s50, %s52
    %p59 = scmp.eq.s32.totalorder %s21, 1
    %p60 = por %p58, %p59
    %p61 = scmp.ne.s32.totalorder %s52, %s53
    %p62 = scmp.eq.s32.totalorder %s21, 0
    %p63 = por %p61, %p62
    %p64 = scmp.ne.s32.totalorder %s52, %s53
    %p65 = scmp.eq.s32.totalorder %s22, 1
    %p66 = por %p64, %p65
    %p68 = scmp.ne.s32.totalorder %s53, %s67
    %p69 = scmp.eq.s32.totalorder %s22, 0
    %p70 = por %p68, %p69
    %s72 = sadd.s32 %s71, 1
    %p75 = scmp.eq.s32.totalorder %s16, 1
    %p76 = scmp.ne.s32.totalorder %s71, %s73
    %p77 = scmp.eq.s32.totalorder %s16, 0
    %p78 = por %p76, %p77
    %p79 = scmp.ne.s32.totalorder %s71, %s73
    %p80 = scmp.eq.s32.totalorder %s21, 1
    %p81 = por %p79, %p80
    %p82 = scmp.ne.s32.totalorder %s73, %s74
    %p83 = scmp.eq.s32.totalorder %s21, 0
    %p84 = por %p82, %p83
    %p85 = scmp.ne.s32.totalorder %s73, %s74
    %p86 = scmp.eq.s32.totalorder %s22, 1
    %p87 = por %p85, %p86
    %p89 = scmp.ne.s32.totalorder %s74, %s88
    %p90 = scmp.eq.s32.totalorder %s22, 0
    %p91 = por %p89, %p90
    %s93 = sadd.s32 %s92, 1
    %p96 = scmp.eq.s32.totalorder %s16, 1
    %p97 = scmp.ne.s32.totalorder %s92, %s94
    %p98 = scmp.eq.s32.totalorder %s16, 0
    %p99 = por %p97, %p98
    %p100 = scmp.ne.s32.totalorder %s92, %s94
    %p101 = scmp.eq.s32.totalorder %s21, 1
    %p102 = por %p100, %p101
    %p103 = scmp.ne.s32.totalorder %s94, %s95
    %p104 = scmp.eq.s32.totalorder %s21, 0
    %p105 = por %p103, %p104
    %p106 = scmp.ne.s32.totalorder %s94, %s95
    %p107 = scmp.eq.s32.totalorder %s22, 1
    %p108 = por %p106, %p107
    %p110 = scmp.ne.s32.totalorder %s95, %s109
    %p111 = scmp.eq.s32.totalorder %s22, 0
    %p112 = por %p110, %p111
    %s114 = sadd.s32 %s113, 1
    %p117 = scmp.eq.s32.totalorder %s16, 1
    %p118 = scmp.ne.s32.totalorder %s113, %s115
    %p119 = scmp.eq.s32.totalorder %s16, 0
    %p120 = por %p118, %p119
    %p121 = scmp.ne.s32.totalorder %s113, %s115
    %p122 = scmp.eq.s32.totalorder %s21, 1
    %p123 = por %p121, %p122
    %p124 = scmp.ne.s32.totalorder %s115, %s116
    %p125 = scmp.eq.s32.totalorder %s21, 0
    %p126 = por %p124, %p125
    %p127 = scmp.ne.s32.totalorder %s115, %s116
    %p128 = scmp.eq.s32.totalorder %s22, 1
    %p129 = por %p127, %p128
    %p131 = scmp.ne.s32.totalorder %s116, %s130
    %p132 = scmp.eq.s32.totalorder %s22, 0
    %p133 = por %p131, %p132
    %s135 = sadd.s32 %s134, 1
    %p138 = scmp.eq.s32.totalorder %s16, 1
    %p139 = scmp.ne.s32.totalorder %s134, %s136
    %p140 = scmp.eq.s32.totalorder %s16, 0
    %p141 = por %p139, %p140
    %p142 = scmp.ne.s32.totalorder %s134, %s136
    %p143 = scmp.eq.s32.totalorder %s21, 1
    %p144 = por %p142, %p143
    %p145 = scmp.ne.s32.totalorder %s136, %s137
    %p146 = scmp.eq.s32.totalorder %s21, 0
    %p147 = por %p145, %p146
    %p148 = scmp.ne.s32.totalorder %s136, %s137
    %p149 = scmp.eq.s32.totalorder %s22, 1
    %p150 = por %p148, %p149
    %p152 = scmp.ne.s32.totalorder %s137, %s151
    %p153 = scmp.eq.s32.totalorder %s22, 0
    %p154 = por %p152, %p153
    %s156 = sadd.s32 %s155, 1
    %p159 = scmp.eq.s32.totalorder %s16, 1
    %p160 = scmp.ne.s32.totalorder %s155, %s157
    %p161 = scmp.eq.s32.totalorder %s16, 0
    %p162 = por %p160, %p161
    %p163 = scmp.ne.s32.totalorder %s155, %s157
    %p164 = scmp.eq.s32.totalorder %s21, 1
    %p165 = por %p163, %p164
    %p166 = scmp.ne.s32.totalorder %s157, %s158
    %p167 = scmp.eq.s32.totalorder %s21, 0
    %p168 = por %p166, %p167
    %p169 = scmp.ne.s32.totalorder %s157, %s158
    %p170 = scmp.eq.s32.totalorder %s22, 1
    %p171 = por %p169, %p170
    %p173 = scmp.ne.s32.totalorder %s158, %s172
    %p174 = scmp.eq.s32.totalorder %s22, 0
    %p175 = por %p173, %p174
    %s177 = sadd.s32 %s176, 1
    %p180 = scmp.eq.s32.totalorder %s16, 1
    %p181 = scmp.ne.s32.totalorder %s176, %s178
    %p182 = scmp.eq.s32.totalorder %s16, 0
    %p183 = por %p181, %p182
    %p184 = scmp.ne.s32.totalorder %s176, %s178
    %p185 = scmp.eq.s32.totalorder %s21, 1
    %p186 = por %p184, %p185
    %p187 = scmp.ne.s32.totalorder %s178, %s179
    %p188 = scmp.eq.s32.totalorder %s21, 0
    %p189 = por %p187, %p188
    %p190 = scmp.ne.s32.totalorder %s178, %s179
    %p191 = scmp.eq.s32.totalorder %s22, 1
    %p192 = por %p190, %p191
    %p194 = scmp.ne.s32.totalorder %s179, %s193
    %p195 = scmp.eq.s32.totalorder %s22, 0
    %p196 = por %p194, %p195
    %s198 = sadd.s32 %s197, 1
    %p201 = scmp.eq.s32.totalorder %s16, 1
    %p202 = scmp.ne.s32.totalorder %s197, %s199
    %p203 = scmp.eq.s32.totalorder %s16, 0
    %p204 = por %p202, %p203
    %p205 = scmp.ne.s32.totalorder %s197, %s199
    %p206 = scmp.eq.s32.totalorder %s21, 1
    %p207 = por %p205, %p206
    %p208 = scmp.ne.s32.totalorder %s199, %s200
    %p209 = scmp.eq.s32.totalorder %s21, 0
    %p210 = por %p208, %p209
    %p211 = scmp.ne.s32.totalorder %s199, %s200
    %p212 = scmp.eq.s32.totalorder %s22, 1
    %p213 = por %p211, %p212
    %p215 = scmp.ne.s32.totalorder %s200, %s214
    %p216 = scmp.eq.s32.totalorder %s22, 0
    %p217 = por %p215, %p216
    %s219 = sadd.s32 %s218, 1
    %p222 = scmp.eq.s32.totalorder %s16, 1
    %p223 = scmp.ne.s32.totalorder %s218, %s220
    %p224 = scmp.eq.s32.totalorder %s16, 0
    %p225 = por %p223, %p224
    %p226 = scmp.ne.s32.totalorder %s218, %s220
    %p227 = scmp.eq.s32.totalorder %s21, 1
    %p228 = por %p226, %p227
    %p229 = scmp.ne.s32.totalorder %s220, %s221
    %p230 = scmp.eq.s32.totalorder %s21, 0
    %p231 = por %p229, %p230
    %p232 = scmp.ne.s32.totalorder %s220, %s221
    %p233 = scmp.eq.s32.totalorder %s22, 1
    %p234 = por %p232, %p233
    %p236 = scmp.ne.s32.totalorder %s221, %s235
    %p237 = scmp.eq.s32.totalorder %s22, 0
    %p238 = por %p236, %p237
    %s239 = ssub.s32 %s16, %s23
    %p240 = scmp.eq.s32.totalorder %s239, 0
    %s242 = sadd.s32 %s241, 1
    %s243 = scalar_select %p240, %s241, %s242
    %p246 = pneg %p240
    %p247 = scmp.eq.s32.totalorder %s16, 1
    %p248 = por %p246, %p247
    %p249 = scmp.ne.s32.totalorder %s241, %s244
    %p250 = scmp.eq.s32.totalorder %s16, 0
    %p251 = por %p249, %p250
    %p252 = scmp.ne.s32.totalorder %s241, %s244
    %p253 = scmp.eq.s32.totalorder %s21, 1
    %p254 = por %p252, %p253
    %p255 = scmp.ne.s32.totalorder %s244, %s245
    %p256 = scmp.eq.s32.totalorder %s21, 0
    %p257 = por %p255, %p256
    %p258 = scmp.ne.s32.totalorder %s244, %s245
    %p259 = scmp.eq.s32.totalorder %s22, 1
    %p260 = por %p258, %p259
    %p262 = scmp.ne.s32.totalorder %s245, %s261
    %p263 = scmp.eq.s32.totalorder %s22, 0
    %p264 = por %p262, %p263
    %p265 = scmp.le.s32.totalorder 1, %s16
    %p266 = scmp.lt.s32.totalorder %s16, 3
    %p267 = pnand %p265, %p266
    %p268 = pneg %p267
    // Predicated region
    $region9: #{gemma_forward.1} parent=5 // pred_check
      _
    $region10: #{gemma_forward.1} parent=5 // pred_check_branch
      %270 = sbr.rel (%p267) target = $region12
    $region11: #{gemma_forward.1} parent=5 // pred_region
      %s271 = ssub.s32 %s16, 1
      // Predicated region
      $region13: #{gemma_forward.1} parent=11 // pred_check
        %p272 = pneg %p63
      $region14: #{gemma_forward.1} parent=11 // pred_check_branch
        %274 = sbr.rel (%p272) target = $region16
      $region15: #{gemma_forward.1} parent=11 // pred_region
        _
      $region16: #{gemma_forward.1} parent=11 // pred_fallthru
        _
      // Predicated region
      $region17: #{gemma_forward.1} parent=11 // pred_check
        %p275 = pneg %p84
      $region18: #{gemma_forward.1} parent=11 // pred_check_branch
        %277 = sbr.rel (%p275) target = $region20
      $region19: #{gemma_forward.1} parent=11 // pred_region
        _
      $region20: #{gemma_forward.1} parent=11 // pred_fallthru
        _
      // Predicated region
      $region21: #{gemma_forward.1} parent=11 // pred_check
        %p278 = pneg %p105
      $region22: #{gemma_forward.1} parent=11 // pred_check_branch
        %280 = sbr.rel (%p278) target = $region24
      $region23: #{gemma_forward.1} parent=11 // pred_region
        _
      $region24: #{gemma_forward.1} parent=11 // pred_fallthru
        _
      // Predicated region
      $region25: #{gemma_forward.1} parent=11 // pred_check
        %p281 = pneg %p126
      $region26: #{gemma_forward.1} parent=11 // pred_check_branch
        %283 = sbr.rel (%p281) target = $region28
      $region27: #{gemma_forward.1} parent=11 // pred_region
        _
      $region28: #{gemma_forward.1} parent=11 // pred_fallthru
        _
      // Predicated region
      $region29: #{gemma_forward.1} parent=11 // pred_check
        %p284 = pneg %p147
      $region30: #{gemma_forward.1} parent=11 // pred_check_branch
        %286 = sbr.rel (%p284) target = $region32
      $region31: #{gemma_forward.1} parent=11 // pred_region
        _
      $region32: #{gemma_forward.1} parent=11 // pred_fallthru
        _
      // Predicated region
      $region33: #{gemma_forward.1} parent=11 // pred_check
        %p287 = pneg %p168
      $region34: #{gemma_forward.1} parent=11 // pred_check_branch
        %289 = sbr.rel (%p287) target = $region36
      $region35: #{gemma_forward.1} parent=11 // pred_region
        _
      $region36: #{gemma_forward.1} parent=11 // pred_fallthru
        _
      // Predicated region
      $region37: #{gemma_forward.1} parent=11 // pred_check
        %p290 = pneg %p189
      $region38: #{gemma_forward.1} parent=11 // pred_check_branch
        %292 = sbr.rel (%p290) target = $region40
      $region39: #{gemma_forward.1} parent=11 // pred_region
        _
      $region40: #{gemma_forward.1} parent=11 // pred_fallthru
        _
      // Predicated region
      $region41: #{gemma_forward.1} parent=11 // pred_check
        %p293 = pneg %p210
      $region42: #{gemma_forward.1} parent=11 // pred_check_branch
        %295 = sbr.rel (%p293) target = $region44
      $region43: #{gemma_forward.1} parent=11 // pred_region
        _
      $region44: #{gemma_forward.1} parent=11 // pred_fallthru
        _
      // Predicated region
      $region45: #{gemma_forward.1} parent=11 // pred_check
        %p296 = pneg %p231
      $region46: #{gemma_forward.1} parent=11 // pred_check_branch
        %298 = sbr.rel (%p296) target = $region48
      $region47: #{gemma_forward.1} parent=11 // pred_region
        _
      $region48: #{gemma_forward.1} parent=11 // pred_fallthru
        _
    $region12: #{gemma_forward.1} parent=5 // pred_fallthru
      _
    %p299 = scmp.lt.s32.totalorder %s16, 2
    // Predicated region
    $region49: #{gemma_forward.1} parent=5 // pred_check
      %p300 = pneg %p299
    $region50: #{gemma_forward.1} parent=5 // pred_check_branch
      %302 = sbr.rel (%p300) target = $region52
    $region51: #{gemma_forward.1} parent=5 // pred_region
      // Predicated region
      $region53: #{gemma_forward.1} parent=51 // pred_check
        %p303 = pneg %p36
      $region54: #{gemma_forward.1} parent=51 // pred_check_branch
        %305 = sbr.rel (%p303) target = $region56
      $region55: #{gemma_forward.1} parent=51 // pred_region
        %p306 = scmp.lt.s32.totalorder %s16, 1
        %s307 = scalar_select %p306, %s16, 1
        %s308 = smul.addr %s307, 8
        %s309 = scalar_lea.vmem %s0, %s308
      $region56: #{gemma_forward.1} parent=51 // pred_fallthru
        _
    $region52: #{gemma_forward.1} parent=5 // pred_fallthru
      _
    %p310 = scmp.le.s32.totalorder 1, %s16
    %p311 = scmp.lt.s32.totalorder %s16, 3
    %p312 = pnand %p310, %p311
    %p313 = pneg %p312
    // Predicated region
    $region57: #{gemma_forward.1} parent=5 // pred_check
      _
    $region58: #{gemma_forward.1} parent=5 // pred_check_branch
      %315 = sbr.rel (%p312) target = $region60
    $region59: #{gemma_forward.1} parent=5 // pred_region
      %s316 = ssub.s32 %s16, 1
      %p317 = scmp.lt.s32.totalorder %s21, 1
      %s318 = scalar_select %p317, %s21, 1
      %s319 = smul.addr %s318, 8
      %s320 = scalar_lea.vmem %s0, %s319
      %p321 = pneg %p42
      %p322 = pneg %p39
      %p323 = pneg %p63
      %p324 = pneg %p60
      %p325 = pneg %p84
      %p326 = pneg %p81
      %p327 = pneg %p105
      %p328 = pneg %p102
      %p329 = pneg %p126
      %p330 = pneg %p123
      %p331 = pneg %p147
      %p332 = pneg %p144
      %p333 = pneg %p168
      %p334 = pneg %p165
      %p335 = pneg %p189
      %p336 = pneg %p186
      %p337 = pneg %p210
      %p338 = pneg %p207
      %p339 = pneg %p231
      %p340 = pneg %p228
      %p341 = pneg %p257
      %p342 = pneg %p254
      %p343 = scmp.lt.s32.totalorder %s21, 1
      %s344 = scalar_select %p343, %s21, 1
      %s345 = smul.addr %s344, 2
      %s346 = scalar_lea.vmem %s10, %s345
      %p347 = scmp.lt.s32.totalorder %s21, 1
      %s348 = scalar_select %p347, %s21, 1
      %s349 = smul.addr %s348, 8
      %s350 = scalar_lea.vmem %s0, %s349
      %p351 = scmp.lt.s32.totalorder %s21, 1
      %s352 = scalar_select %p351, %s21, 1
      %s353 = smul.addr %s352, 2
      %s354 = scalar_lea.vmem %s10, %s353
      %v356 = vld [vmem:[%s350] sm:$0xff]
      %v357 = vld [vmem:[%s1] sm:$0xff]
      %v358 = vld [vmem:[%s2] sm:$0xff]
      %v359 = vmul.f32 %v357, 0.35355338
      %v360 = vmul.f32 %v358, 0.35355338
      %v361 = vlaneseq
      %v362 = vshrl.u32 %v361, 7
      %v363 = vlaneseq
      %v364 = vand.u32 %v363, 127
      %vm365 = vcmp.ge.s32.totalorder %v362, %v364
      %v366 = vsel %vm365, 0.0, -1e+30
      %v367 = vld [vmem:[%s3] sm:$0xf]
      %v368 = vld [vmem:[%s3 + $0x4] sm:$0xf]
      %v369 = vld [vmem:[%s3 + $0x8] sm:$0xf]
      %v370 = vld [vmem:[%s3 + $0xc] sm:$0xf]
      %v371 = vld [vmem:[%s4] sm:$0xf]
      %v372 = vld [vmem:[%s4 + $0x4] sm:$0xf]
      %v373 = vld [vmem:[%s4 + $0x8] sm:$0xf]
      %v374 = vld [vmem:[%s4 + $0xc] sm:$0xf]
      %v375 = vld [vmem:[%s5] sm:$0xf]
      %v376 = vld [vmem:[%s5 + $0x4] sm:$0xf]
      %v377 = vld [vmem:[%s5 + $0x8] sm:$0xf]
      %v378 = vld [vmem:[%s5 + $0xc] sm:$0xf]
      %v379 = vld [vmem:[%s6] sm:$0xf]
      %v380 = vld [vmem:[%s6 + $0x4] sm:$0xf]
      %v381 = vld [vmem:[%s6 + $0x8] sm:$0xf]
      %v382 = vld [vmem:[%s6 + $0xc] sm:$0xf]
      %v383 = vld [vmem:[%s6 + $0x10] sm:$0xf]
      %v384 = vld [vmem:[%s6 + $0x14] sm:$0xf]
      %v385 = vld [vmem:[%s6 + $0x18] sm:$0xf]
      %v386 = vld [vmem:[%s6 + $0x1c] sm:$0xf]
      %v387 = vld [vmem:[%s7] sm:$0x1]
      %v388 = vld [vmem:[%s8] sm:$0x1]
      %v389 = vmul.f32 %v356, %v356
      %vm390 = vcmask 261120
      %v391 = vsel %vm390, %v389, 0.0
      %392 = vadd.xlane.f32.xlu0 %v391
      %v393 = vpop.xlane.xlu0 %392
      %v394 = vrcp.pop 32.0
      %v395 = vmul.f32 %v393, %v394
      %v396 = vadd.f32 %v395, 1e-06
      %v397 = vrsqrt.pop %v396
      %v398 = vmul.f32 %v356, %v397
      %v400 = vlaneseq
      %v401 = vshrl.u32 %v400, 7
      %v402 = vsub.s32 0, %v401
      %v403 = vrot.slane %v387, %v402
      %v405 = vmul.f32 %v398, %v403
      %v406 = vpack.c.bf16 %v405, %v405
      %v411 = vunpack.c.l.b16 %v367
      %v412 = vunpack.c.l.b16 %v368
      %v413 = vunpack.c.l.b16 %v369
      %v414 = vunpack.c.l.b16 %v370
      %v415 = vpack.c.b16 %v412, %v411
      %v416 = vpack.c.b16 %v414, %v413
      %v420 = vsel %vm390, %v406, 0
      %422 = vmatprep.subr.bf16.mxu0 0
      %423 = vmatpush1.bf16.msra.mxu0 0
      %424 = vmatprep.subr.bf16.mxu0 0
      %425 = vmatpush1.bf16.msra.mxu0 0
      %426 = vmatprep.subr.bf16.mxu0 0
      %427 = vmatpush1.bf16.msra.mxu0 0
      %428 = vmatprep.subr.bf16.mxu0 0
      %429 = vmatpush1.bf16.msra.mxu0 0
      %430 = vmatprep.subr.bf16.mxu0 0
      %431 = vmatpush1.bf16.msra.mxu0 0
      %432 = vmatprep.subr.bf16.mxu0 0
      %433 = vmatpush1.bf16.msra.mxu0 0
      %434 = vmatprep.subr.bf16.mxu0 0
      %435 = vmatpush1.bf16.msra.mxu0 %v416
      %436 = vmatprep.subr.bf16.mxu0 0
      %437 = vmatpush1.bf16.msra.mxu0 %v415
      %438 = vmatprep.subr.bf16.mxu0 0
      %439 = vmatpush2.bf16.msra.mxu0 0
      %440 = vmatprep.subr.bf16.mxu0 0
      %441 = vmatpush2.bf16.msra.mxu0 0
      %442 = vmatprep.subr.bf16.mxu0 0
      %443 = vmatpush2.bf16.msra.mxu0 0
      %444 = vmatprep.subr.bf16.mxu0 0
      %445 = vmatpush2.bf16.msra.mxu0 0
      %446 = vmatprep.subr.bf16.mxu0 0
      %447 = vmatpush2.bf16.msra.mxu0 0
      %448 = vmatprep.subr.bf16.mxu0 0
      %449 = vmatpush2.bf16.msra.mxu0 0
      %450 = vmatprep.subr.bf16.mxu0 0
      %451 = vmatpush2.bf16.msra.mxu0 0
      %452 = vmatprep.subr.bf16.mxu0 0
      %453 = vmatpush2.bf16.msra.mxu0 0
      %454 = vmatprep.mubr.bf16.mxu0 0
      %455 = vmatmul.mubr.bf16.gmra.mxu0 %v420
      %v456 = vpop.f32.mrf.mxu0
      %v457 = vadd.f32 0.0, %v456
      %v458 = vpop.f32.mrf.mxu0
      %v459 = vpop.f32.mrf.mxu0
      %v460 = vpop.f32.mrf.mxu0
      %461 = vdwg.mxu0
      %v462 = vmul.f32 %v457, %v359
      %464 = vrot.lane.b32.xlu0 %v360, 16
      %v465 = vpop.permute.xlu0 %464
      %v467 = vmul.f32 %v457, %v465
      %469 = vrot.lane.b32.xlu0 %v467, 112
      %v470 = vpop.permute.xlu0 %469
      %v472 = vsub.f32 %v462, %v470
      %v473 = vpack.c.bf16 %v472, %v472
      %v474 = vmul.f32 %v457, %v360
      %476 = vrot.lane.b32.xlu0 %v359, 16
      %v477 = vpop.permute.xlu0 %476
      %v479 = vmul.f32 %v457, %v477
      %481 = vrot.lane.b32.xlu0 %v479, 112
      %v482 = vpop.permute.xlu0 %481
      %v484 = vadd.f32 %v474, %v482
      %v485 = vpack.c.bf16 %v484, %v484
      %487 = vrot.lane.b32.xlu0 %v357, 32
      %v488 = vpop.permute.xlu0 %487
      %v490 = vmul.f32 %v457, %v488
      %492 = vrot.lane.b32.xlu0 %v358, 40
      %v493 = vpop.permute.xlu0 %492
      %v495 = vmul.f32 %v457, %v493
      %497 = vrot.lane.b32.xlu0 %v495, 120
      %v498 = vpop.permute.xlu0 %497
      %v500 = vsub.f32 %v490, %v498
      %v501 = vpack.c.bf16 %v500, %v500
      %502 = vrot.lane.b32.xlu0 %v358, 32
      %v503 = vpop.permute.xlu0 %502
      %v505 = vmul.f32 %v457, %v503
      %506 = vrot.lane.b32.xlu0 %v357, 40
      %v507 = vpop.permute.xlu0 %506
      %v509 = vmul.f32 %v457, %v507
      %511 = vrot.lane.b32.xlu0 %v509, 120
      %v512 = vpop.permute.xlu0 %511
      %v514 = vadd.f32 %v505, %v512
      %v515 = vpack.c.bf16 %v514, %v514
      %v516 = vpack.c.bf16 %v457, %v457
      %v518 = vrot.slane %v473, 4
      %519 = vrot.lane.b32.xlu0 %v518, 124
      %v520 = vpop.permute.xlu0 %519
      %vm521 = vcmask 1043456
      %v524 = vsel %vm521, %v473, %v520
      %v526 = vrot.slane %v485, 4
      %527 = vrot.lane.b32.xlu0 %v526, 124
      %v528 = vpop.permute.xlu0 %527
      %v531 = vsel %vm521, %v485, %v528
      %533 = vrot.lane.b32.xlu0 %v515, 96
      %v534 = vpop.permute.xlu0 %533
      %vm535 = vcmask 31744
      %v536 = vsel %vm535, %v531, 0
      %v539 = vsel %vm535, %v534, 0
      %541 = vmatprep.subr.bf16.mxu0 0
      %542 = vmatpush1.bf16.xpose.msra.mxu0 0
      %543 = vmatprep.subr.bf16.mxu0 0
      %544 = vmatpush1.bf16.xpose.msra.mxu0 0
      %545 = vmatprep.subr.bf16.mxu0 0
      %546 = vmatpush1.bf16.xpose.msra.mxu0 0
      %547 = vmatprep.subr.bf16.mxu0 0
      %548 = vmatpush1.bf16.xpose.msra.mxu0 0
      %549 = vmatprep.subr.bf16.mxu0 0
      %550 = vmatpush1.bf16.xpose.msra.mxu0 0
      %551 = vmatprep.subr.bf16.mxu0 0
      %552 = vmatpush1.bf16.xpose.msra.mxu0 0
      %553 = vmatprep.subr.bf16.mxu0 0
      %554 = vmatpush1.bf16.xpose.msra.mxu0 0
      %555 = vmatprep.subr.bf16.mxu0 0
      %556 = vmatpush1.bf16.xpose.msra.mxu0 %v539
      %557 = vmatprep.subr.bf16.mxu0 0
      %558 = vmatpush2.bf16.xpose.msra.mxu0 0
      %559 = vmatprep.subr.bf16.mxu0 0
      %560 = vmatpush2.bf16.xpose.msra.mxu0 0
      %561 = vmatprep.subr.bf16.mxu0 0
      %562 = vmatpush2.bf16.xpose.msra.mxu0 0
      %563 = vmatprep.subr.bf16.mxu0 0
      %564 = vmatpush2.bf16.xpose.msra.mxu0 0
      %565 = vmatprep.subr.bf16.mxu0 0
      %566 = vmatpush2.bf16.xpose.msra.mxu0 0
      %567 = vmatprep.subr.bf16.mxu0 0
      %568 = vmatpush2.bf16.xpose.msra.mxu0 0
      %569 = vmatprep.subr.bf16.mxu0 0
      %570 = vmatpush2.bf16.xpose.msra.mxu0 0
      %571 = vmatprep.subr.bf16.mxu0 0
      %572 = vmatpush2.bf16.xpose.msra.mxu0 0
      %573 = vmatprep.mubr.bf16.mxu0 0
      %574 = vmatmul.mubr.bf16.gmra.mxu0 %v536
      %v575 = vpop.f32.mrf.mxu0
      %v576 = vadd.f32 0.0, %v575
      %v577 = vpop.f32.mrf.mxu0
      %v578 = vpop.f32.mrf.mxu0
      %v579 = vadd.f32 0.0, %v578
      %v580 = vpop.f32.mrf.mxu0
      %581 = vdwg.mxu0
      %583 = vrot.lane.b32.xlu0 %v501, 96
      %v584 = vpop.permute.xlu0 %583
      %v585 = vsel %vm535, %v524, 0
      %v588 = vsel %vm535, %v584, 0
      %590 = vmatprep.subr.bf16.mxu0 0
      %591 = vmatpush1.bf16.xpose.msra.mxu0 0
      %592 = vmatprep.subr.bf16.mxu0 0
      %593 = vmatpush1.bf16.xpose.msra.mxu0 0
      %594 = vmatprep.subr.bf16.mxu0 0
      %595 = vmatpush1.bf16.xpose.msra.mxu0 0
      %596 = vmatprep.subr.bf16.mxu0 0
      %597 = vmatpush1.bf16.xpose.msra.mxu0 0
      %598 = vmatprep.subr.bf16.mxu0 0
      %599 = vmatpush1.bf16.xpose.msra.mxu0 0
      %600 = vmatprep.subr.bf16.mxu0 0
      %601 = vmatpush1.bf16.xpose.msra.mxu0 0
      %602 = vmatprep.subr.bf16.mxu0 0
      %603 = vmatpush1.bf16.xpose.msra.mxu0 0
      %604 = vmatprep.subr.bf16.mxu0 0
      %605 = vmatpush1.bf16.xpose.msra.mxu0 %v588
      %606 = vmatprep.subr.bf16.mxu0 0
      %607 = vmatpush2.bf16.xpose.msra.mxu0 0
      %608 = vmatprep.subr.bf16.mxu0 0
      %609 = vmatpush2.bf16.xpose.msra.mxu0 0
      %610 = vmatprep.subr.bf16.mxu0 0
      %611 = vmatpush2.bf16.xpose.msra.mxu0 0
      %612 = vmatprep.subr.bf16.mxu0 0
      %613 = vmatpush2.bf16.xpose.msra.mxu0 0
      %614 = vmatprep.subr.bf16.mxu0 0
      %615 = vmatpush2.bf16.xpose.msra.mxu0 0
      %616 = vmatprep.subr.bf16.mxu0 0
      %617 = vmatpush2.bf16.xpose.msra.mxu0 0
      %618 = vmatprep.subr.bf16.mxu0 0
      %619 = vmatpush2.bf16.xpose.msra.mxu0 0
      %620 = vmatprep.subr.bf16.mxu0 0
      %621 = vmatpush2.bf16.xpose.msra.mxu0 0
      %622 = vmatprep.mubr.bf16.mxu0 0
      %623 = vmatmul.mubr.bf16.gmra.mxu0 %v585
      %v624 = vpop.f32.mrf.mxu0
      %v625 = vadd.f32 %v576, %v624
      %v626 = vpop.f32.mrf.mxu0
      %v627 = vpop.f32.mrf.mxu0
      %v628 = vadd.f32 %v579, %v627
      %v629 = vpop.f32.mrf.mxu0
      %630 = vdwg.mxu0
      %v631 = vadd.f32 %v625, %v366
      %v632 = vadd.f32 %v628, %v366
      %vm633 = vcmask 64512
      %v634 = vsel %vm633, %v631, -inf
      %635 = vmax.xlane.f32.xlu0 %v634
      %v636 = vpop.xlane.xlu0 %635
      %v637 = vsel %vm633, %v632, -inf
      %638 = vmax.xlane.f32.xlu0 %v637
      %v639 = vpop.xlane.xlu0 %638
      %v640 = vsub.f32 %v631, %v636
      %v641 = vsub.f32 %v632, %v639
      %v642 = vmul.f32 %v640, 1.442695
      %v643 = vpow.pop %v642
      %v644 = vmul.f32 %v641, 1.442695
      %v645 = vpow.pop %v644
      %v646 = vsel %vm633, %v643, 0.0
      %647 = vadd.xlane.f32.xlu0 %v646
      %v648 = vpop.xlane.xlu0 %647
      %v649 = vsel %vm633, %v645, 0.0
      %650 = vadd.xlane.f32.xlu0 %v649
      %v651 = vpop.xlane.xlu0 %650
      %v652 = vpack.c.bf16 %v645, %v643
      %654 = vrot.lane.b32.xlu0 %v516, 80
      %v655 = vpop.permute.xlu0 %654
      %v657 = vsel %vm633, %v652, 0
      %v660 = vsel %vm521, %v655, 0
      %662 = vmatprep.subr.bf16.mxu0 0
      %663 = vmatpush1.bf16.msra.mxu0 0
      %664 = vmatprep.subr.bf16.mxu0 0
      %665 = vmatpush1.bf16.msra.mxu0 0
      %666 = vmatprep.subr.bf16.mxu0 0
      %667 = vmatpush1.bf16.msra.mxu0 0
      %668 = vmatprep.subr.bf16.mxu0 0
      %669 = vmatpush1.bf16.msra.mxu0 0
      %670 = vmatprep.subr.bf16.mxu0 0
      %671 = vmatpush1.bf16.msra.mxu0 0
      %672 = vmatprep.subr.bf16.mxu0 0
      %673 = vmatpush1.bf16.msra.mxu0 0
      %674 = vmatprep.subr.bf16.mxu0 0
      %675 = vmatpush1.bf16.msra.mxu0 0
      %676 = vmatprep.subr.bf16.mxu0 0
      %677 = vmatpush1.bf16.msra.mxu0 %v660
      %678 = vmatprep.subr.bf16.mxu0 0
      %679 = vmatpush2.bf16.msra.mxu0 0
      %680 = vmatprep.subr.bf16.mxu0 0
      %681 = vmatpush2.bf16.msra.mxu0 0
      %682 = vmatprep.subr.bf16.mxu0 0
      %683 = vmatpush2.bf16.msra.mxu0 0
      %684 = vmatprep.subr.bf16.mxu0 0
      %685 = vmatpush2.bf16.msra.mxu0 0
      %686 = vmatprep.subr.bf16.mxu0 0
      %687 = vmatpush2.bf16.msra.mxu0 0
      %688 = vmatprep.subr.bf16.mxu0 0
      %689 = vmatpush2.bf16.msra.mxu0 0
      %690 = vmatprep.subr.bf16.mxu0 0
      %691 = vmatpush2.bf16.msra.mxu0 0
      %692 = vmatprep.subr.bf16.mxu0 0
      %693 = vmatpush2.bf16.msra.mxu0 0
      %694 = vmatprep.mubr.bf16.mxu0 0
      %695 = vmatmul.mubr.bf16.gmra.mxu0 %v657
      %v696 = vpop.f32.mrf.mxu0
      %v697 = vadd.f32 0.0, %v696
      %v698 = vpop.f32.mrf.mxu0
      %v699 = vpop.f32.mrf.mxu0
      %v700 = vadd.f32 0.0, %v699
      %v701 = vpop.f32.mrf.mxu0
      %702 = vdwg.mxu0
      %v703 = vrcp.pop %v648
      %v704 = vrcp.pop %v651
      %v705 = vmul.f32 %v697, %v703
      %v706 = vmul.f32 %v700, %v704
      %v707 = vpack.c.bf16 %v705, %v705
      %v709 = vsel %vm633, %v707, 0
      %v712 = vsel %vm521, %v371, 0
      %714 = vmatprep.subr.bf16.mxu0 0
      %715 = vmatpush1.bf16.msra.mxu0 0
      %716 = vmatprep.subr.bf16.mxu0 0
      %717 = vmatpush1.bf16.msra.mxu0 0
      %718 = vmatprep.subr.bf16.mxu0 0
      %719 = vmatpush1.bf16.msra.mxu0 0
      %720 = vmatprep.subr.bf16.mxu0 0
      %721 = vmatpush1.bf16.msra.mxu0 0
      %722 = vmatprep.subr.bf16.mxu0 0
      %723 = vmatpush1.bf16.msra.mxu0 0
      %724 = vmatprep.subr.bf16.mxu0 0
      %725 = vmatpush1.bf16.msra.mxu0 0
      %726 = vmatprep.subr.bf16.mxu0 0
      %727 = vmatpush1.bf16.msra.mxu0 0
      %728 = vmatprep.subr.bf16.mxu0 0
      %729 = vmatpush1.bf16.msra.mxu0 %v712
      %730 = vmatprep.subr.bf16.mxu0 0
      %731 = vmatpush2.bf16.msra.mxu0 0
      %732 = vmatprep.subr.bf16.mxu0 0
      %733 = vmatpush2.bf16.msra.mxu0 0
      %734 = vmatprep.subr.bf16.mxu0 0
      %735 = vmatpush2.bf16.msra.mxu0 0
      %736 = vmatprep.subr.bf16.mxu0 0
      %737 = vmatpush2.bf16.msra.mxu0 0
      %738 = vmatprep.subr.bf16.mxu0 0
      %739 = vmatpush2.bf16.msra.mxu0 0
      %740 = vmatprep.subr.bf16.mxu0 0
      %741 = vmatpush2.bf16.msra.mxu0 0
      %742 = vmatprep.subr.bf16.mxu0 0
      %743 = vmatpush2.bf16.msra.mxu0 0
      %744 = vmatprep.subr.bf16.mxu0 0
      %745 = vmatpush2.bf16.msra.mxu0 0
      %746 = vmatprep.mubr.bf16.mxu0 0
      %747 = vmatmul.mubr.bf16.gmra.mxu0 %v709
      %v748 = vpop.f32.mrf.mxu0
      %v749 = vadd.f32 0.0, %v748
      %v750 = vpop.f32.mrf.mxu0
      %v751 = vpop.f32.mrf.mxu0
      %v752 = vpop.f32.mrf.mxu0
      %753 = vdwg.mxu0
      %v754 = vadd.f32 %v356, %v749
      %v755 = vpack.c.bf16 %v706, %v706
      %v757 = vsel %vm633, %v755, 0
      %v760 = vsel %vm521, %v372, 0
      %762 = vmatprep.subr.bf16.mxu0 0
      %763 = vmatpush1.bf16.msra.mxu0 0
      %764 = vmatprep.subr.bf16.mxu0 0
      %765 = vmatpush1.bf16.msra.mxu0 0
      %766 = vmatprep.subr.bf16.mxu0 0
      %767 = vmatpush1.bf16.msra.mxu0 0
      %768 = vmatprep.subr.bf16.mxu0 0
      %769 = vmatpush1.bf16.msra.mxu0 0
      %770 = vmatprep.subr.bf16.mxu0 0
      %771 = vmatpush1.bf16.msra.mxu0 0
      %772 = vmatprep.subr.bf16.mxu0 0
      %773 = vmatpush1.bf16.msra.mxu0 0
      %774 = vmatprep.subr.bf16.mxu0 0
      %775 = vmatpush1.bf16.msra.mxu0 0
      %776 = vmatprep.subr.bf16.mxu0 0
      %777 = vmatpush1.bf16.msra.mxu0 %v760
      %778 = vmatprep.subr.bf16.mxu0 0
      %779 = vmatpush2.bf16.msra.mxu0 0
      %780 = vmatprep.subr.bf16.mxu0 0
      %781 = vmatpush2.bf16.msra.mxu0 0
      %782 = vmatprep.subr.bf16.mxu0 0
      %783 = vmatpush2.bf16.msra.mxu0 0
      %784 = vmatprep.subr.bf16.mxu0 0
      %785 = vmatpush2.bf16.msra.mxu0 0
      %786 = vmatprep.subr.bf16.mxu0 0
      %787 = vmatpush2.bf16.msra.mxu0 0
      %788 = vmatprep.subr.bf16.mxu0 0
      %789 = vmatpush2.bf16.msra.mxu0 0
      %790 = vmatprep.subr.bf16.mxu0 0
      %791 = vmatpush2.bf16.msra.mxu0 0
      %792 = vmatprep.subr.bf16.mxu0 0
      %793 = vmatpush2.bf16.msra.mxu0 0
      %794 = vmatprep.mubr.bf16.mxu0 0
      %795 = vmatmul.mubr.bf16.gmra.mxu0 %v757
      %v796 = vpop.f32.mrf.mxu0
      %v797 = vadd.f32 0.0, %v796
      %v798 = vpop.f32.mrf.mxu0
      %v799 = vpop.f32.mrf.mxu0
      %v800 = vpop.f32.mrf.mxu0
      %801 = vdwg.mxu0
      %v802 = vadd.f32 %v754, %v797
      %804 = vrot.lane.b32.xlu0 %v531, 120
      %v805 = vpop.permute.xlu0 %804
      %806 = vrot.lane.b32.xlu0 %v515, 92
      %v807 = vpop.permute.xlu0 %806
      %v809 = vsel %vm535, %v805, 0
      %v812 = vsel %vm535, %v807, 0
      %814 = vmatprep.subr.bf16.mxu0 0
      %815 = vmatpush1.bf16.xpose.msra.mxu0 0
      %816 = vmatprep.subr.bf16.mxu0 0
      %817 = vmatpush1.bf16.xpose.msra.mxu0 0
      %818 = vmatprep.subr.bf16.mxu0 0
      %819 = vmatpush1.bf16.xpose.msra.mxu0 0
      %820 = vmatprep.subr.bf16.mxu0 0
      %821 = vmatpush1.bf16.xpose.msra.mxu0 0
      %822 = vmatprep.subr.bf16.mxu0 0
      %823 = vmatpush1.bf16.xpose.msra.mxu0 0
      %824 = vmatprep.subr.bf16.mxu0 0
      %825 = vmatpush1.bf16.xpose.msra.mxu0 0
      %826 = vmatprep.subr.bf16.mxu0 0
      %827 = vmatpush1.bf16.xpose.msra.mxu0 0
      %828 = vmatprep.subr.bf16.mxu0 0
      %829 = vmatpush1.bf16.xpose.msra.mxu0 %v812
      %830 = vmatprep.subr.bf16.mxu0 0
      %831 = vmatpush2.bf16.xpose.msra.mxu0 0
      %832 = vmatprep.subr.bf16.mxu0 0
      %833 = vmatpush2.bf16.xpose.msra.mxu0 0
      %834 = vmatprep.subr.bf16.mxu0 0
      %835 = vmatpush2.bf16.xpose.msra.mxu0 0
      %836 = vmatprep.subr.bf16.mxu0 0
      %837 = vmatpush2.bf16.xpose.msra.mxu0 0
      %838 = vmatprep.subr.bf16.mxu0 0
      %839 = vmatpush2.bf16.xpose.msra.mxu0 0
      %840 = vmatprep.subr.bf16.mxu0 0
      %841 = vmatpush2.bf16.xpose.msra.mxu0 0
      %842 = vmatprep.subr.bf16.mxu0 0
      %843 = vmatpush2.bf16.xpose.msra.mxu0 0
      %844 = vmatprep.subr.bf16.mxu0 0
      %845 = vmatpush2.bf16.xpose.msra.mxu0 0
      %846 = vmatprep.mubr.bf16.mxu0 0
      %847 = vmatmul.mubr.bf16.gmra.mxu0 %v809
      %v848 = vpop.f32.mrf.mxu0
      %v849 = vadd.f32 0.0, %v848
      %v850 = vpop.f32.mrf.mxu0
      %v851 = vpop.f32.mrf.mxu0
      %v852 = vadd.f32 0.0, %v851
      %v853 = vpop.f32.mrf.mxu0
      %854 = vdwg.mxu0
      %856 = vrot.lane.b32.xlu0 %v524, 120
      %v857 = vpop.permute.xlu0 %856
      %858 = vrot.lane.b32.xlu0 %v501, 92
      %v859 = vpop.permute.xlu0 %858
      %v861 = vsel %vm535, %v857, 0
      %v864 = vsel %vm535, %v859, 0
      %866 = vmatprep.subr.bf16.mxu0 0
      %867 = vmatpush1.bf16.xpose.msra.mxu0 0
      %868 = vmatprep.subr.bf16.mxu0 0
      %869 = vmatpush1.bf16.xpose.msra.mxu0 0
      %870 = vmatprep.subr.bf16.mxu0 0
      %871 = vmatpush1.bf16.xpose.msra.mxu0 0
      %872 = vmatprep.subr.bf16.mxu0 0
      %873 = vmatpush1.bf16.xpose.msra.mxu0 0
      %874 = vmatprep.subr.bf16.mxu0 0
      %875 = vmatpush1.bf16.xpose.msra.mxu0 0
      %876 = vmatprep.subr.bf16.mxu0 0
      %877 = vmatpush1.bf16.xpose.msra.mxu0 0
      %878 = vmatprep.subr.bf16.mxu0 0
      %879 = vmatpush1.bf16.xpose.msra.mxu0 0
      %880 = vmatprep.subr.bf16.mxu0 0
      %881 = vmatpush1.bf16.xpose.msra.mxu0 %v864
      %882 = vmatprep.subr.bf16.mxu0 0
      %883 = vmatpush2.bf16.xpose.msra.mxu0 0
      %884 = vmatprep.subr.bf16.mxu0 0
      %885 = vmatpush2.bf16.xpose.msra.mxu0 0
      %886 = vmatprep.subr.bf16.mxu0 0
      %887 = vmatpush2.bf16.xpose.msra.mxu0 0
      %888 = vmatprep.subr.bf16.mxu0 0
      %889 = vmatpush2.bf16.xpose.msra.mxu0 0
      %890 = vmatprep.subr.bf16.mxu0 0
      %891 = vmatpush2.bf16.xpose.msra.mxu0 0
      %892 = vmatprep.subr.bf16.mxu0 0
      %893 = vmatpush2.bf16.xpose.msra.mxu0 0
      %894 = vmatprep.subr.bf16.mxu0 0
      %895 = vmatpush2.bf16.xpose.msra.mxu0 0
      %896 = vmatprep.subr.bf16.mxu0 0
      %897 = vmatpush2.bf16.xpose.msra.mxu0 0
      %898 = vmatprep.mubr.bf16.mxu0 0
      %899 = vmatmul.mubr.bf16.gmra.mxu0 %v861
      %v900 = vpop.f32.mrf.mxu0
      %v901 = vadd.f32 %v849, %v900
      %v902 = vpop.f32.mrf.mxu0
      %v903 = vpop.f32.mrf.mxu0
      %v904 = vadd.f32 %v852, %v903
      %v905 = vpop.f32.mrf.mxu0
      %906 = vdwg.mxu0
      %v907 = vadd.f32 %v901, %v366
      %v908 = vadd.f32 %v904, %v366
      %v909 = vsel %vm633, %v907, -inf
      %910 = vmax.xlane.f32.xlu0 %v909
      %v911 = vpop.xlane.xlu0 %910
      %v912 = vsel %vm633, %v908, -inf
      %913 = vmax.xlane.f32.xlu0 %v912
      %v914 = vpop.xlane.xlu0 %913
      %v915 = vsub.f32 %v907, %v911
      %v916 = vsub.f32 %v908, %v914
      %v917 = vmul.f32 %v915, 1.442695
      %v918 = vpow.pop %v917
      %v919 = vmul.f32 %v916, 1.442695
      %v920 = vpow.pop %v919
      %v921 = vsel %vm633, %v918, 0.0
      %922 = vadd.xlane.f32.xlu0 %v921
      %v923 = vpop.xlane.xlu0 %922
      %v924 = vsel %vm633, %v920, 0.0
      %925 = vadd.xlane.f32.xlu0 %v924
      %v926 = vpop.xlane.xlu0 %925
      %v927 = vpack.c.bf16 %v920, %v918
      %928 = vrot.lane.b32.xlu0 %v516, 72
      %v929 = vpop.permute.xlu0 %928
      %v931 = vsel %vm633, %v927, 0
      %v934 = vsel %vm521, %v929, 0
      %936 = vmatprep.subr.bf16.mxu0 0
      %937 = vmatpush1.bf16.msra.mxu0 0
      %938 = vmatprep.subr.bf16.mxu0 0
      %939 = vmatpush1.bf16.msra.mxu0 0
      %940 = vmatprep.subr.bf16.mxu0 0
      %941 = vmatpush1.bf16.msra.mxu0 0
      %942 = vmatprep.subr.bf16.mxu0 0
      %943 = vmatpush1.bf16.msra.mxu0 0
      %944 = vmatprep.subr.bf16.mxu0 0
      %945 = vmatpush1.bf16.msra.mxu0 0
      %946 = vmatprep.subr.bf16.mxu0 0
      %947 = vmatpush1.bf16.msra.mxu0 0
      %948 = vmatprep.subr.bf16.mxu0 0
      %949 = vmatpush1.bf16.msra.mxu0 0
      %950 = vmatprep.subr.bf16.mxu0 0
      %951 = vmatpush1.bf16.msra.mxu0 %v934
      %952 = vmatprep.subr.bf16.mxu0 0
      %953 = vmatpush2.bf16.msra.mxu0 0
      %954 = vmatprep.subr.bf16.mxu0 0
      %955 = vmatpush2.bf16.msra.mxu0 0
      %956 = vmatprep.subr.bf16.mxu0 0
      %957 = vmatpush2.bf16.msra.mxu0 0
      %958 = vmatprep.subr.bf16.mxu0 0
      %959 = vmatpush2.bf16.msra.mxu0 0
      %960 = vmatprep.subr.bf16.mxu0 0
      %961 = vmatpush2.bf16.msra.mxu0 0
      %962 = vmatprep.subr.bf16.mxu0 0
      %963 = vmatpush2.bf16.msra.mxu0 0
      %964 = vmatprep.subr.bf16.mxu0 0
      %965 = vmatpush2.bf16.msra.mxu0 0
      %966 = vmatprep.subr.bf16.mxu0 0
      %967 = vmatpush2.bf16.msra.mxu0 0
      %968 = vmatprep.mubr.bf16.mxu0 0
      %969 = vmatmul.mubr.bf16.gmra.mxu0 %v931
      %v970 = vpop.f32.mrf.mxu0
      %v971 = vadd.f32 0.0, %v970
      %v972 = vpop.f32.mrf.mxu0
      %v973 = vpop.f32.mrf.mxu0
      %v974 = vadd.f32 0.0, %v973
      %v975 = vpop.f32.mrf.mxu0
      %976 = vdwg.mxu0
      %v977 = vrcp.pop %v923
      %v978 = vrcp.pop %v926
      %v979 = vmul.f32 %v971, %v977
      %v980 = vmul.f32 %v974, %v978
      %v981 = vpack.c.bf16 %v979, %v979
      %v983 = vsel %vm633, %v981, 0
      %v986 = vsel %vm521, %v373, 0
      %988 = vmatprep.subr.bf16.mxu0 0
      %989 = vmatpush1.bf16.msra.mxu0 0
      %990 = vmatprep.subr.bf16.mxu0 0
      %991 = vmatpush1.bf16.msra.mxu0 0
      %992 = vmatprep.subr.bf16.mxu0 0
      %993 = vmatpush1.bf16.msra.mxu0 0
      %994 = vmatprep.subr.bf16.mxu0 0
      %995 = vmatpush1.bf16.msra.mxu0 0
      %996 = vmatprep.subr.bf16.mxu0 0
      %997 = vmatpush1.bf16.msra.mxu0 0
      %998 = vmatprep.subr.bf16.mxu0 0
      %999 = vmatpush1.bf16.msra.mxu0 0
      %1000 = vmatprep.subr.bf16.mxu0 0
      %1001 = vmatpush1.bf16.msra.mxu0 0
      %1002 = vmatprep.subr.bf16.mxu0 0
      %1003 = vmatpush1.bf16.msra.mxu0 %v986
      %1004 = vmatprep.subr.bf16.mxu0 0
      %1005 = vmatpush2.bf16.msra.mxu0 0
      %1006 = vmatprep.subr.bf16.mxu0 0
      %1007 = vmatpush2.bf16.msra.mxu0 0
      %1008 = vmatprep.subr.bf16.mxu0 0
      %1009 = vmatpush2.bf16.msra.mxu0 0
      %1010 = vmatprep.subr.bf16.mxu0 0
      %1011 = vmatpush2.bf16.msra.mxu0 0
      %1012 = vmatprep.subr.bf16.mxu0 0
      %1013 = vmatpush2.bf16.msra.mxu0 0
      %1014 = vmatprep.subr.bf16.mxu0 0
      %1015 = vmatpush2.bf16.msra.mxu0 0
      %1016 = vmatprep.subr.bf16.mxu0 0
      %1017 = vmatpush2.bf16.msra.mxu0 0
      %1018 = vmatprep.subr.bf16.mxu0 0
      %1019 = vmatpush2.bf16.msra.mxu0 0
      %1020 = vmatprep.mubr.bf16.mxu0 0
      %1021 = vmatmul.mubr.bf16.gmra.mxu0 %v983
      %v1022 = vpop.f32.mrf.mxu0
      %v1023 = vadd.f32 0.0, %v1022
      %v1024 = vpop.f32.mrf.mxu0
      %v1025 = vpop.f32.mrf.mxu0
      %v1026 = vpop.f32.mrf.mxu0
      %1027 = vdwg.mxu0
      %v1028 = vadd.f32 %v802, %v1023
      %v1029 = vpack.c.bf16 %v980, %v980
      %v1031 = vsel %vm633, %v1029, 0
      %v1034 = vsel %vm521, %v374, 0
      %1036 = vmatprep.subr.bf16.mxu0 0
      %1037 = vmatpush1.bf16.msra.mxu0 0
      %1038 = vmatprep.subr.bf16.mxu0 0
      %1039 = vmatpush1.bf16.msra.mxu0 0
      %1040 = vmatprep.subr.bf16.mxu0 0
      %1041 = vmatpush1.bf16.msra.mxu0 0
      %1042 = vmatprep.subr.bf16.mxu0 0
      %1043 = vmatpush1.bf16.msra.mxu0 0
      %1044 = vmatprep.subr.bf16.mxu0 0
      %1045 = vmatpush1.bf16.msra.mxu0 0
      %1046 = vmatprep.subr.bf16.mxu0 0
      %1047 = vmatpush1.bf16.msra.mxu0 0
      %1048 = vmatprep.subr.bf16.mxu0 0
      %1049 = vmatpush1.bf16.msra.mxu0 0
      %1050 = vmatprep.subr.bf16.mxu0 0
      %1051 = vmatpush1.bf16.msra.mxu0 %v1034
      %1052 = vmatprep.subr.bf16.mxu0 0
      %1053 = vmatpush2.bf16.msra.mxu0 0
      %1054 = vmatprep.subr.bf16.mxu0 0
      %1055 = vmatpush2.bf16.msra.mxu0 0
      %1056 = vmatprep.subr.bf16.mxu0 0
      %1057 = vmatpush2.bf16.msra.mxu0 0
      %1058 = vmatprep.subr.bf16.mxu0 0
      %1059 = vmatpush2.bf16.msra.mxu0 0
      %1060 = vmatprep.subr.bf16.mxu0 0
      %1061 = vmatpush2.bf16.msra.mxu0 0
      %1062 = vmatprep.subr.bf16.mxu0 0
      %1063 = vmatpush2.bf16.msra.mxu0 0
      %1064 = vmatprep.subr.bf16.mxu0 0
      %1065 = vmatpush2.bf16.msra.mxu0 0
      %1066 = vmatprep.subr.bf16.mxu0 0
      %1067 = vmatpush2.bf16.msra.mxu0 0
      %1068 = vmatprep.mubr.bf16.mxu0 0
      %1069 = vmatmul.mubr.bf16.gmra.mxu0 %v1031
      %v1070 = vpop.f32.mrf.mxu0
      %v1071 = vadd.f32 0.0, %v1070
      %v1072 = vpop.f32.mrf.mxu0
      %v1073 = vpop.f32.mrf.mxu0
      %v1074 = vpop.f32.mrf.mxu0
      %1075 = vdwg.mxu0
      %v1076 = vadd.f32 %v1028, %v1071
      %v1077 = vmul.f32 %v1076, %v1076
      %v1078 = vsel %vm390, %v1077, 0.0
      %1079 = vadd.xlane.f32.xlu0 %v1078
      %v1080 = vpop.xlane.xlu0 %1079
      %v1081 = vmul.f32 %v1080, %v394
      %v1082 = vadd.f32 %v1081, 1e-06
      %v1083 = vrsqrt.pop %v1082
      %v1084 = vmul.f32 %v1076, %v1083
      %v1086 = vlaneseq
      %v1087 = vshrl.u32 %v1086, 7
      %v1088 = vsub.s32 0, %v1087
      %v1089 = vrot.slane %v388, %v1088
      %v1091 = vmul.f32 %v1084, %v1089
      %v1092 = vpack.c.bf16 %v1091, %v1091
      %v1097 = vunpack.c.l.b16 %v375
      %v1098 = vunpack.c.l.b16 %v376
      %v1099 = vunpack.c.l.b16 %v377
      %v1100 = vunpack.c.l.b16 %v378
      %v1101 = vpack.c.b16 %v1098, %v1097
      %v1102 = vpack.c.b16 %v1100, %v1099
      %v1106 = vsel %vm390, %v1092, 0
      %1108 = vmatprep.subr.bf16.mxu0 0
      %1109 = vmatpush1.bf16.msra.mxu0 0
      %1110 = vmatprep.subr.bf16.mxu0 0
      %1111 = vmatpush1.bf16.msra.mxu0 0
      %1112 = vmatprep.subr.bf16.mxu0 0
      %1113 = vmatpush1.bf16.msra.mxu0 0
      %1114 = vmatprep.subr.bf16.mxu0 0
      %1115 = vmatpush1.bf16.msra.mxu0 0
      %1116 = vmatprep.subr.bf16.mxu0 0
      %1117 = vmatpush1.bf16.msra.mxu0 0
      %1118 = vmatprep.subr.bf16.mxu0 0
      %1119 = vmatpush1.bf16.msra.mxu0 0
      %1120 = vmatprep.subr.bf16.mxu0 0
      %1121 = vmatpush1.bf16.msra.mxu0 %v1102
      %1122 = vmatprep.subr.bf16.mxu0 0
      %1123 = vmatpush1.bf16.msra.mxu0 %v1101
      %1124 = vmatprep.subr.bf16.mxu0 0
      %1125 = vmatpush2.bf16.msra.mxu0 0
      %1126 = vmatprep.subr.bf16.mxu0 0
      %1127 = vmatpush2.bf16.msra.mxu0 0
      %1128 = vmatprep.subr.bf16.mxu0 0
      %1129 = vmatpush2.bf16.msra.mxu0 0
      %1130 = vmatprep.subr.bf16.mxu0 0
      %1131 = vmatpush2.bf16.msra.mxu0 0
      %1132 = vmatprep.subr.bf16.mxu0 0
      %1133 = vmatpush2.bf16.msra.mxu0 0
      %1134 = vmatprep.subr.bf16.mxu0 0
      %1135 = vmatpush2.bf16.msra.mxu0 0
      %1136 = vmatprep.subr.bf16.mxu0 0
      %1137 = vmatpush2.bf16.msra.mxu0 0
      %1138 = vmatprep.subr.bf16.mxu0 0
      %1139 = vmatpush2.bf16.msra.mxu0 0
      %1140 = vmatprep.mubr.bf16.mxu0 0
      %1141 = vmatmul.mubr.bf16.gmra.mxu0 %v1106
      %v1142 = vpop.f32.mrf.mxu0
      %v1143 = vadd.f32 0.0, %v1142
      %v1144 = vpop.f32.mrf.mxu0
      %v1145 = vpop.f32.mrf.mxu0
      %v1146 = vpop.f32.mrf.mxu0
      %1147 = vdwg.mxu0
      %v1148 = vmul.f32 %v1143, 0.5
      %v1149 = vmul.f32 %v1143, 0.044715
      %v1150 = vmul.f32 %v1149, %v1143
      %v1151 = vmul.f32 %v1150, %v1143
      %v1152 = vadd.f32 %v1143, %v1151
      %v1153 = vmul.f32 %v1152, 0.7978846
      %v1154 = vtanh.pop %v1153
      %v1155 = vadd.f32 %v1154, 1.0
      %v1156 = vmul.f32 %v1148, %v1155
      %1158 = vrot.lane.b32.xlu0 %v1143, 64
      %v1159 = vpop.permute.xlu0 %1158
      %v1161 = vmul.f32 %v1156, %v1159
      %v1162 = vpack.c.bf16 %v1161, %v1161
      %v1171 = vunpack.c.l.b16 %v379
      %v1172 = vunpack.c.l.b16 %v380
      %v1173 = vunpack.c.l.b16 %v381
      %v1174 = vunpack.c.l.b16 %v382
      %v1175 = vunpack.c.l.b16 %v383
      %v1176 = vunpack.c.l.b16 %v384
      %v1177 = vunpack.c.l.b16 %v385
      %v1178 = vunpack.c.l.b16 %v386
      %v1179 = vpack.c.b16 %v1172, %v1171
      %v1180 = vpack.c.b16 %v1174, %v1173
      %v1181 = vpack.c.b16 %v1176, %v1175
      %v1182 = vpack.c.b16 %v1178, %v1177
      %vm1187 = vcmask 523264
      %v1189 = vsel %vm1187, %v1162, 0
      %1191 = vmatprep.subr.bf16.mxu0 0
      %1192 = vmatpush1.bf16.msra.mxu0 0
      %1193 = vmatprep.subr.bf16.mxu0 0
      %1194 = vmatpush1.bf16.msra.mxu0 0
      %1195 = vmatprep.subr.bf16.mxu0 0
      %1196 = vmatpush1.bf16.msra.mxu0 0
      %1197 = vmatprep.subr.bf16.mxu0 0
      %1198 = vmatpush1.bf16.msra.mxu0 0
      %1199 = vmatprep.subr.bf16.mxu0 0
      %1200 = vmatpush1.bf16.msra.mxu0 %v1182
      %1201 = vmatprep.subr.bf16.mxu0 0
      %1202 = vmatpush1.bf16.msra.mxu0 %v1181
      %1203 = vmatprep.subr.bf16.mxu0 0
      %1204 = vmatpush1.bf16.msra.mxu0 %v1180
      %1205 = vmatprep.subr.bf16.mxu0 0
      %1206 = vmatpush1.bf16.msra.mxu0 %v1179
      %1207 = vmatprep.subr.bf16.mxu0 0
      %1208 = vmatpush2.bf16.msra.mxu0 0
      %1209 = vmatprep.subr.bf16.mxu0 0
      %1210 = vmatpush2.bf16.msra.mxu0 0
      %1211 = vmatprep.subr.bf16.mxu0 0
      %1212 = vmatpush2.bf16.msra.mxu0 0
      %1213 = vmatprep.subr.bf16.mxu0 0
      %1214 = vmatpush2.bf16.msra.mxu0 0
      %1215 = vmatprep.subr.bf16.mxu0 0
      %1216 = vmatpush2.bf16.msra.mxu0 0
      %1217 = vmatprep.subr.bf16.mxu0 0
      %1218 = vmatpush2.bf16.msra.mxu0 0
      %1219 = vmatprep.subr.bf16.mxu0 0
      %1220 = vmatpush2.bf16.msra.mxu0 0
      %1221 = vmatprep.subr.bf16.mxu0 0
      %1222 = vmatpush2.bf16.msra.mxu0 0
      %1223 = vmatprep.mubr.bf16.mxu0 0
      %1224 = vmatmul.mubr.bf16.gmra.mxu0 %v1189
      %v1225 = vpop.f32.mrf.mxu0
      %v1226 = vadd.f32 0.0, %v1225
      %v1227 = vpop.f32.mrf.mxu0
      %v1228 = vpop.f32.mrf.mxu0
      %v1229 = vpop.f32.mrf.mxu0
      %1230 = vdwg.mxu0
      %v1231 = vadd.f32 %v1076, %v1226
      %s1232 = scalar_lea.vmem %s3, 16
      %v1233 = vld [vmem:[%s1232] sm:$0xf]
      %v1234 = vld [vmem:[%s1232 + $0x4] sm:$0xf]
      %v1235 = vld [vmem:[%s1232 + $0x8] sm:$0xf]
      %v1236 = vld [vmem:[%s1232 + $0xc] sm:$0xf]
      %s1237 = scalar_lea.vmem %s4, 16
      %v1238 = vld [vmem:[%s1237] sm:$0xf]
      %v1239 = vld [vmem:[%s1237 + $0x4] sm:$0xf]
      %v1240 = vld [vmem:[%s1237 + $0x8] sm:$0xf]
      %v1241 = vld [vmem:[%s1237 + $0xc] sm:$0xf]
      %s1242 = scalar_lea.vmem %s5, 16
      %v1243 = vld [vmem:[%s1242] sm:$0xf]
      %v1244 = vld [vmem:[%s1242 + $0x4] sm:$0xf]
      %v1245 = vld [vmem:[%s1242 + $0x8] sm:$0xf]
      %v1246 = vld [vmem:[%s1242 + $0xc] sm:$0xf]
      %s1247 = scalar_lea.vmem %s6, 32
      %v1248 = vld [vmem:[%s1247] sm:$0xf]
      %v1249 = vld [vmem:[%s1247 + $0x4] sm:$0xf]
      %v1250 = vld [vmem:[%s1247 + $0x8] sm:$0xf]
      %v1251 = vld [vmem:[%s1247 + $0xc] sm:$0xf]
      %v1252 = vld [vmem:[%s1247 + $0x10] sm:$0xf]
      %v1253 = vld [vmem:[%s1247 + $0x14] sm:$0xf]
      %v1254 = vld [vmem:[%s1247 + $0x18] sm:$0xf]
      %v1255 = vld [vmem:[%s1247 + $0x1c] sm:$0xf]
      %s1256 = scalar_lea.vmem %s7, 1
      %v1257 = vld [vmem:[%s1256] sm:$0x1]
      %s1258 = scalar_lea.vmem %s8, 1
      %v1259 = vld [vmem:[%s1258] sm:$0x1]
      %v1260 = vmul.f32 %v1231, %v1231
      %v1261 = vsel %vm390, %v1260, 0.0
      %1262 = vadd.xlane.f32.xlu0 %v1261
      %v1263 = vpop.xlane.xlu0 %1262
      %v1264 = vmul.f32 %v1263, %v394
      %v1265 = vadd.f32 %v1264, 1e-06
      %v1266 = vrsqrt.pop %v1265
      %v1267 = vmul.f32 %v1231, %v1266
      %v1269 = vlaneseq
      %v1270 = vshrl.u32 %v1269, 7
      %v1271 = vsub.s32 0, %v1270
      %v1272 = vrot.slane %v1257, %v1271
      %v1274 = vmul.f32 %v1267, %v1272
      %v1275 = vpack.c.bf16 %v1274, %v1274
      %v1280 = vunpack.c.l.b16 %v1233
      %v1281 = vunpack.c.l.b16 %v1234
      %v1282 = vunpack.c.l.b16 %v1235
      %v1283 = vunpack.c.l.b16 %v1236
      %v1284 = vpack.c.b16 %v1281, %v1280
      %v1285 = vpack.c.b16 %v1283, %v1282
      %v1289 = vsel %vm390, %v1275, 0
      %1291 = vmatprep.subr.bf16.mxu0 0
      %1292 = vmatpush1.bf16.msra.mxu0 0
      %1293 = vmatprep.subr.bf16.mxu0 0
      %1294 = vmatpush1.bf16.msra.mxu0 0
      %1295 = vmatprep.subr.bf16.mxu0 0
      %1296 = vmatpush1.bf16.msra.mxu0 0
      %1297 = vmatprep.subr.bf16.mxu0 0
      %1298 = vmatpush1.bf16.msra.mxu0 0
      %1299 = vmatprep.subr.bf16.mxu0 0
      %1300 = vmatpush1.bf16.msra.mxu0 0
      %1301 = vmatprep.subr.bf16.mxu0 0
      %1302 = vmatpush1.bf16.msra.mxu0 0
      %1303 = vmatprep.subr.bf16.mxu0 0
      %1304 = vmatpush1.bf16.msra.mxu0 %v1285
      %1305 = vmatprep.subr.bf16.mxu0 0
      %1306 = vmatpush1.bf16.msra.mxu0 %v1284
      %1307 = vmatprep.subr.bf16.mxu0 0
      %1308 = vmatpush2.bf16.msra.mxu0 0
      %1309 = vmatprep.subr.bf16.mxu0 0
      %1310 = vmatpush2.bf16.msra.mxu0 0
      %1311 = vmatprep.subr.bf16.mxu0 0
      %1312 = vmatpush2.bf16.msra.mxu0 0
      %1313 = vmatprep.subr.bf16.mxu0 0
      %1314 = vmatpush2.bf16.msra.mxu0 0
      %1315 = vmatprep.subr.bf16.mxu0 0
      %1316 = vmatpush2.bf16.msra.mxu0 0
      %1317 = vmatprep.subr.bf16.mxu0 0
      %1318 = vmatpush2.bf16.msra.mxu0 0
      %1319 = vmatprep.subr.bf16.mxu0 0
      %1320 = vmatpush2.bf16.msra.mxu0 0
      %1321 = vmatprep.subr.bf16.mxu0 0
      %1322 = vmatpush2.bf16.msra.mxu0 0
      %1323 = vmatprep.mubr.bf16.mxu0 0
      %1324 = vmatmul.mubr.bf16.gmra.mxu0 %v1289
      %v1325 = vpop.f32.mrf.mxu0
      %v1326 = vadd.f32 0.0, %v1325
      %v1327 = vpop.f32.mrf.mxu0
      %v1328 = vpop.f32.mrf.mxu0
      %v1329 = vpop.f32.mrf.mxu0
      %1330 = vdwg.mxu0
      %v1331 = vmul.f32 %v1326, %v359
      %v1332 = vmul.f32 %v1326, %v465
      %1334 = vrot.lane.b32.xlu0 %v1332, 112
      %v1335 = vpop.permute.xlu0 %1334
      %v1337 = vsub.f32 %v1331, %v1335
      %v1338 = vpack.c.bf16 %v1337, %v1337
      %v1339 = vmul.f32 %v1326, %v360
      %v1340 = vmul.f32 %v1326, %v477
      %1342 = vrot.lane.b32.xlu0 %v1340, 112
      %v1343 = vpop.permute.xlu0 %1342
      %v1345 = vadd.f32 %v1339, %v1343
      %v1346 = vpack.c.bf16 %v1345, %v1345
      %v1347 = vmul.f32 %v1326, %v488
      %v1348 = vmul.f32 %v1326, %v493
      %1350 = vrot.lane.b32.xlu0 %v1348, 120
      %v1351 = vpop.permute.xlu0 %1350
      %v1353 = vsub.f32 %v1347, %v1351
      %v1354 = vpack.c.bf16 %v1353, %v1353
      %v1355 = vmul.f32 %v1326, %v503
      %v1356 = vmul.f32 %v1326, %v507
      %1358 = vrot.lane.b32.xlu0 %v1356, 120
      %v1359 = vpop.permute.xlu0 %1358
      %v1361 = vadd.f32 %v1355, %v1359
      %v1362 = vpack.c.bf16 %v1361, %v1361
      %v1363 = vpack.c.bf16 %v1326, %v1326
      %v1365 = vrot.slane %v1338, 4
      %1366 = vrot.lane.b32.xlu0 %v1365, 124
      %v1367 = vpop.permute.xlu0 %1366
      %v1370 = vsel %vm521, %v1338, %v1367
      %v1372 = vrot.slane %v1346, 4
      %1373 = vrot.lane.b32.xlu0 %v1372, 124
      %v1374 = vpop.permute.xlu0 %1373
      %v1377 = vsel %vm521, %v1346, %v1374
      %1379 = vrot.lane.b32.xlu0 %v1362, 96
      %v1380 = vpop.permute.xlu0 %1379
      %v1381 = vsel %vm535, %v1377, 0
      %v1384 = vsel %vm535, %v1380, 0
      %1386 = vmatprep.subr.bf16.mxu0 0
      %1387 = vmatpush1.bf16.xpose.msra.mxu0 0
      %1388 = vmatprep.subr.bf16.mxu0 0
      %1389 = vmatpush1.bf16.xpose.msra.mxu0 0
      %1390 = vmatprep.subr.bf16.mxu0 0
      %1391 = vmatpush1.bf16.xpose.msra.mxu0 0
      %1392 = vmatprep.subr.bf16.mxu0 0
      %1393 = vmatpush1.bf16.xpose.msra.mxu0 0
      %1394 = vmatprep.subr.bf16.mxu0 0
      %1395 = vmatpush1.bf16.xpose.msra.mxu0 0
      %1396 = vmatprep.subr.bf16.mxu0 0
      %1397 = vmatpush1.bf16.xpose.msra.mxu0 0
      %1398 = vmatprep.subr.bf16.mxu0 0
      %1399 = vmatpush1.bf16.xpose.msra.mxu0 0
      %1400 = vmatprep.subr.bf16.mxu0 0
      %1401 = vmatpush1.bf16.xpose.msra.mxu0 %v1384
      %1402 = vmatprep.subr.bf16.mxu0 0
      %1403 = vmatpush2.bf16.xpose.msra.mxu0 0
      %1404 = vmatprep.subr.bf16.mxu0 0
      %1405 = vmatpush2.bf16.xpose.msra.mxu0 0
      %1406 = vmatprep.subr.bf16.mxu0 0
      %1407 = vmatpush2.bf16.xpose.msra.mxu0 0
      %1408 = vmatprep.subr.bf16.mxu0 0
      %1409 = vmatpush2.bf16.xpose.msra.mxu0 0
      %1410 = vmatprep.subr.bf16.mxu0 0
      %1411 = vmatpush2.bf16.xpose.msra.mxu0 0
      %1412 = vmatprep.subr.bf16.mxu0 0
      %1413 = vmatpush2.bf16.xpose.msra.mxu0 0
      %1414 = vmatprep.subr.bf16.mxu0 0
      %1415 = vmatpush2.bf16.xpose.msra.mxu0 0
      %1416 = vmatprep.subr.bf16.mxu0 0
      %1417 = vmatpush2.bf16.xpose.msra.mxu0 0
      %1418 = vmatprep.mubr.bf16.mxu0 0
      %1419 = vmatmul.mubr.bf16.gmra.mxu0 %v1381
      %v1420 = vpop.f32.mrf.mxu0
      %v1421 = vadd.f32 0.0, %v1420
      %v1422 = vpop.f32.mrf.mxu0
      %v1423 = vpop.f32.mrf.mxu0
      %v1424 = vadd.f32 0.0, %v1423
      %v1425 = vpop.f32.mrf.mxu0
      %1426 = vdwg.mxu0
      %1428 = vrot.lane.b32.xlu0 %v1354, 96
      %v1429 = vpop.permute.xlu0 %1428
      %v1430 = vsel %vm535, %v1370, 0
      %v1433 = vsel %vm535, %v1429, 0
      %1435 = vmatprep.subr.bf16.mxu0 0
      %1436 = vmatpush1.bf16.xpose.msra.mxu0 0
      %1437 = vmatprep.subr.bf16.mxu0 0
      %1438 = vmatpush1.bf16.xpose.msra.mxu0 0
      %1439 = vmatprep.subr.bf16.mxu0 0
      %1440 = vmatpush1.bf16.xpose.msra.mxu0 0
      %1441 = vmatprep.subr.bf16.mxu0 0
      %1442 = vmatpush1.bf16.xpose.msra.mxu0 0
      %1443 = vmatprep.subr.bf16.mxu0 0
      %1444 = vmatpush1.bf16.xpose.msra.mxu0 0
      %1445 = vmatprep.subr.bf16.mxu0 0
      %1446 = vmatpush1.bf16.xpose.msra.mxu0 0
      %1447 = vmatprep.subr.bf16.mxu0 0
      %1448 = vmatpush1.bf16.xpose.msra.mxu0 0
      %1449 = vmatprep.subr.bf16.mxu0 0
      %1450 = vmatpush1.bf16.xpose.msra.mxu0 %v1433
      %1451 = vmatprep.subr.bf16.mxu0 0
      %1452 = vmatpush2.bf16.xpose.msra.mxu0 0
      %1453 = vmatprep.subr.bf16.mxu0 0
      %1454 = vmatpush2.bf16.xpose.msra.mxu0 0
      %1455 = vmatprep.subr.bf16.mxu0 0
      %1456 = vmatpush2.bf16.xpose.msra.mxu0 0
      %1457 = vmatprep.subr.bf16.mxu0 0
      %1458 = vmatpush2.bf16.xpose.msra.mxu0 0
      %1459 = vmatprep.subr.bf16.mxu0 0
      %1460 = vmatpush2.bf16.xpose.msra.mxu0 0
      %1461 = vmatprep.subr.bf16.mxu0 0
      %1462 = vmatpush2.bf16.xpose.msra.mxu0 0
      %1463 = vmatprep.subr.bf16.mxu0 0
      %1464 = vmatpush2.bf16.xpose.msra.mxu0 0
      %1465 = vmatprep.subr.bf16.mxu0 0
      %1466 = vmatpush2.bf16.xpose.msra.mxu0 0
      %1467 = vmatprep.mubr.bf16.mxu0 0
      %1468 = vmatmul.mubr.bf16.gmra.mxu0 %v1430
      %v1469 = vpop.f32.mrf.mxu0
      %v1470 = vadd.f32 %v1421, %v1469
      %v1471 = vpop.f32.mrf.mxu0
      %v1472 = vpop.f32.mrf.mxu0
      %v1473 = vadd.f32 %v1424, %v1472
      %v1474 = vpop.f32.mrf.mxu0
      %1475 = vdwg.mxu0
      %v1476 = vadd.f32 %v1470, %v366
      %v1477 = vadd.f32 %v1473, %v366
      %v1478 = vsel %vm633, %v1476, -inf
      %1479 = vmax.xlane.f32.xlu0 %v1478
      %v1480 = vpop.xlane.xlu0 %1479
      %v1481 = vsel %vm633, %v1477, -inf
      %1482 = vmax.xlane.f32.xlu0 %v1481
      %v1483 = vpop.xlane.xlu0 %1482
      %v1484 = vsub.f32 %v1476, %v1480
      %v1485 = vsub.f32 %v1477, %v1483
      %v1486 = vmul.f32 %v1484, 1.442695
      %v1487 = vpow.pop %v1486
      %v1488 = vmul.f32 %v1485, 1.442695
      %v1489 = vpow.pop %v1488
      %v1490 = vsel %vm633, %v1487, 0.0
      %1491 = vadd.xlane.f32.xlu0 %v1490
      %v1492 = vpop.xlane.xlu0 %1491
      %v1493 = vsel %vm633, %v1489, 0.0
      %1494 = vadd.xlane.f32.xlu0 %v1493
      %v1495 = vpop.xlane.xlu0 %1494
      %v1496 = vpack.c.bf16 %v1489, %v1487
      %1498 = vrot.lane.b32.xlu0 %v1363, 80
      %v1499 = vpop.permute.xlu0 %1498
      %v1501 = vsel %vm633, %v1496, 0
      %v1504 = vsel %vm521, %v1499, 0
      %1506 = vmatprep.subr.bf16.mxu0 0
      %1507 = vmatpush1.bf16.msra.mxu0 0
      %1508 = vmatprep.subr.bf16.mxu0 0
      %1509 = vmatpush1.bf16.msra.mxu0 0
      %1510 = vmatprep.subr.bf16.mxu0 0
      %1511 = vmatpush1.bf16.msra.mxu0 0
      %1512 = vmatprep.subr.bf16.mxu0 0
      %1513 = vmatpush1.bf16.msra.mxu0 0
      %1514 = vmatprep.subr.bf16.mxu0 0
      %1515 = vmatpush1.bf16.msra.mxu0 0
      %1516 = vmatprep.subr.bf16.mxu0 0
      %1517 = vmatpush1.bf16.msra.mxu0 0
      %1518 = vmatprep.subr.bf16.mxu0 0
      %1519 = vmatpush1.bf16.msra.mxu0 0
      %1520 = vmatprep.subr.bf16.mxu0 0
      %1521 = vmatpush1.bf16.msra.mxu0 %v1504
      %1522 = vmatprep.subr.bf16.mxu0 0
      %1523 = vmatpush2.bf16.msra.mxu0 0
      %1524 = vmatprep.subr.bf16.mxu0 0
      %1525 = vmatpush2.bf16.msra.mxu0 0
      %1526 = vmatprep.subr.bf16.mxu0 0
      %1527 = vmatpush2.bf16.msra.mxu0 0
      %1528 = vmatprep.subr.bf16.mxu0 0
      %1529 = vmatpush2.bf16.msra.mxu0 0
      %1530 = vmatprep.subr.bf16.mxu0 0
      %1531 = vmatpush2.bf16.msra.mxu0 0
      %1532 = vmatprep.subr.bf16.mxu0 0
      %1533 = vmatpush2.bf16.msra.mxu0 0
      %1534 = vmatprep.subr.bf16.mxu0 0
      %1535 = vmatpush2.bf16.msra.mxu0 0
      %1536 = vmatprep.subr.bf16.mxu0 0
      %1537 = vmatpush2.bf16.msra.mxu0 0
      %1538 = vmatprep.mubr.bf16.mxu0 0
      %1539 = vmatmul.mubr.bf16.gmra.mxu0 %v1501
      %v1540 = vpop.f32.mrf.mxu0
      %v1541 = vadd.f32 0.0, %v1540
      %v1542 = vpop.f32.mrf.mxu0
      %v1543 = vpop.f32.mrf.mxu0
      %v1544 = vadd.f32 0.0, %v1543
      %v1545 = vpop.f32.mrf.mxu0
      %1546 = vdwg.mxu0
      %v1547 = vrcp.pop %v1492
      %v1548 = vrcp.pop %v1495
      %v1549 = vmul.f32 %v1541, %v1547
      %v1550 = vmul.f32 %v1544, %v1548
      %v1551 = vpack.c.bf16 %v1549, %v1549
      %v1553 = vsel %vm633, %v1551, 0
      %v1556 = vsel %vm521, %v1238, 0
      %1558 = vmatprep.subr.bf16.mxu0 0
      %1559 = vmatpush1.bf16.msra.mxu0 0
      %1560 = vmatprep.subr.bf16.mxu0 0
      %1561 = vmatpush1.bf16.msra.mxu0 0
      %1562 = vmatprep.subr.bf16.mxu0 0
      %1563 = vmatpush1.bf16.msra.mxu0 0
      %1564 = vmatprep.subr.bf16.mxu0 0
      %1565 = vmatpush1.bf16.msra.mxu0 0
      %1566 = vmatprep.subr.bf16.mxu0 0
      %1567 = vmatpush1.bf16.msra.mxu0 0
      %1568 = vmatprep.subr.bf16.mxu0 0
      %1569 = vmatpush1.bf16.msra.mxu0 0
      %1570 = vmatprep.subr.bf16.mxu0 0
      %1571 = vmatpush1.bf16.msra.mxu0 0
      %1572 = vmatprep.subr.bf16.mxu0 0
      %1573 = vmatpush1.bf16.msra.mxu0 %v1556
      %1574 = vmatprep.subr.bf16.mxu0 0
      %1575 = vmatpush2.bf16.msra.mxu0 0
      %1576 = vmatprep.subr.bf16.mxu0 0
      %1577 = vmatpush2.bf16.msra.mxu0 0
      %1578 = vmatprep.subr.bf16.mxu0 0
      %1579 = vmatpush2.bf16.msra.mxu0 0
      %1580 = vmatprep.subr.bf16.mxu0 0
      %1581 = vmatpush2.bf16.msra.mxu0 0
      %1582 = vmatprep.subr.bf16.mxu0 0
      %1583 = vmatpush2.bf16.msra.mxu0 0
      %1584 = vmatprep.subr.bf16.mxu0 0
      %1585 = vmatpush2.bf16.msra.mxu0 0
      %1586 = vmatprep.subr.bf16.mxu0 0
      %1587 = vmatpush2.bf16.msra.mxu0 0
      %1588 = vmatprep.subr.bf16.mxu0 0
      %1589 = vmatpush2.bf16.msra.mxu0 0
      %1590 = vmatprep.mubr.bf16.mxu0 0
      %1591 = vmatmul.mubr.bf16.gmra.mxu0 %v1553
      %v1592 = vpop.f32.mrf.mxu0
      %v1593 = vadd.f32 0.0, %v1592
      %v1594 = vpop.f32.mrf.mxu0
      %v1595 = vpop.f32.mrf.mxu0
      %v1596 = vpop.f32.mrf.mxu0
      %1597 = vdwg.mxu0
      %v1598 = vadd.f32 %v1231, %v1593
      %v1599 = vpack.c.bf16 %v1550, %v1550
      %v1601 = vsel %vm633, %v1599, 0
      %v1604 = vsel %vm521, %v1239, 0
      %1606 = vmatprep.subr.bf16.mxu0 0
      %1607 = vmatpush1.bf16.msra.mxu0 0
      %1608 = vmatprep.subr.bf16.mxu0 0
      %1609 = vmatpush1.bf16.msra.mxu0 0
      %1610 = vmatprep.subr.bf16.mxu0 0
      %1611 = vmatpush1.bf16.msra.mxu0 0
      %1612 = vmatprep.subr.bf16.mxu0 0
      %1613 = vmatpush1.bf16.msra.mxu0 0
      %1614 = vmatprep.subr.bf16.mxu0 0
      %1615 = vmatpush1.bf16.msra.mxu0 0
      %1616 = vmatprep.subr.bf16.mxu0 0
      %1617 = vmatpush1.bf16.msra.mxu0 0
      %1618 = vmatprep.subr.bf16.mxu0 0
      %1619 = vmatpush1.bf16.msra.mxu0 0
      %1620 = vmatprep.subr.bf16.mxu0 0
      %1621 = vmatpush1.bf16.msra.mxu0 %v1604
      %1622 = vmatprep.subr.bf16.mxu0 0
      %1623 = vmatpush2.bf16.msra.mxu0 0
      %1624 = vmatprep.subr.bf16.mxu0 0
      %1625 = vmatpush2.bf16.msra.mxu0 0
      %1626 = vmatprep.subr.bf16.mxu0 0
      %1627 = vmatpush2.bf16.msra.mxu0 0
      %1628 = vmatprep.subr.bf16.mxu0 0
      %1629 = vmatpush2.bf16.msra.mxu0 0
      %1630 = vmatprep.subr.bf16.mxu0 0
      %1631 = vmatpush2.bf16.msra.mxu0 0
      %1632 = vmatprep.subr.bf16.mxu0 0
      %1633 = vmatpush2.bf16.msra.mxu0 0
      %1634 = vmatprep.subr.bf16.mxu0 0
      %1635 = vmatpush2.bf16.msra.mxu0 0
      %1636 = vmatprep.subr.bf16.mxu0 0
      %1637 = vmatpush2.bf16.msra.mxu0 0
      %1638 = vmatprep.mubr.bf16.mxu0 0
      %1639 = vmatmul.mubr.bf16.gmra.mxu0 %v1601
      %v1640 = vpop.f32.mrf.mxu0
      %v1641 = vadd.f32 0.0, %v1640
      %v1642 = vpop.f32.mrf.mxu0
      %v1643 = vpop.f32.mrf.mxu0
      %v1644 = vpop.f32.mrf.mxu0
      %1645 = vdwg.mxu0
      %v1646 = vadd.f32 %v1598, %v1641
      %1648 = vrot.lane.b32.xlu0 %v1377, 120
      %v1649 = vpop.permute.xlu0 %1648
      %1650 = vrot.lane.b32.xlu0 %v1362, 92
      %v1651 = vpop.permute.xlu0 %1650
      %v1653 = vsel %vm535, %v1649, 0
      %v1656 = vsel %vm535, %v1651, 0
      %1658 = vmatprep.subr.bf16.mxu0 0
      %1659 = vmatpush1.bf16.xpose.msra.mxu0 0
      %1660 = vmatprep.subr.bf16.mxu0 0
      %1661 = vmatpush1.bf16.xpose.msra.mxu0 0
      %1662 = vmatprep.subr.bf16.mxu0 0
      %1663 = vmatpush1.bf16.xpose.msra.mxu0 0
      %1664 = vmatprep.subr.bf16.mxu0 0
      %1665 = vmatpush1.bf16.xpose.msra.mxu0 0
      %1666 = vmatprep.subr.bf16.mxu0 0
      %1667 = vmatpush1.bf16.xpose.msra.mxu0 0
      %1668 = vmatprep.subr.bf16.mxu0 0
      %1669 = vmatpush1.bf16.xpose.msra.mxu0 0
      %1670 = vmatprep.subr.bf16.mxu0 0
      %1671 = vmatpush1.bf16.xpose.msra.mxu0 0
      %1672 = vmatprep.subr.bf16.mxu0 0
      %1673 = vmatpush1.bf16.xpose.msra.mxu0 %v1656
      %1674 = vmatprep.subr.bf16.mxu0 0
      %1675 = vmatpush2.bf16.xpose.msra.mxu0 0
      %1676 = vmatprep.subr.bf16.mxu0 0
      %1677 = vmatpush2.bf16.xpose.msra.mxu0 0
      %1678 = vmatprep.subr.bf16.mxu0 0
      %1679 = vmatpush2.bf16.xpose.msra.mxu0 0
      %1680 = vmatprep.subr.bf16.mxu0 0
      %1681 = vmatpush2.bf16.xpose.msra.mxu0 0
      %1682 = vmatprep.subr.bf16.mxu0 0
      %1683 = vmatpush2.bf16.xpose.msra.mxu0 0
      %1684 = vmatprep.subr.bf16.mxu0 0
      %1685 = vmatpush2.bf16.xpose.msra.mxu0 0
      %1686 = vmatprep.subr.bf16.mxu0 0
      %1687 = vmatpush2.bf16.xpose.msra.mxu0 0
      %1688 = vmatprep.subr.bf16.mxu0 0
      %1689 = vmatpush2.bf16.xpose.msra.mxu0 0
      %1690 = vmatprep.mubr.bf16.mxu0 0
      %1691 = vmatmul.mubr.bf16.gmra.mxu0 %v1653
      %v1692 = vpop.f32.mrf.mxu0
      %v1693 = vadd.f32 0.0, %v1692
      %v1694 = vpop.f32.mrf.mxu0
      %v1695 = vpop.f32.mrf.mxu0
      %v1696 = vadd.f32 0.0, %v1695
      %v1697 = vpop.f32.mrf.mxu0
      %1698 = vdwg.mxu0
      %1700 = vrot.lane.b32.xlu0 %v1370, 120
      %v1701 = vpop.permute.xlu0 %1700
      %1702 = vrot.lane.b32.xlu0 %v1354, 92
      %v1703 = vpop.permute.xlu0 %1702
      %v1705 = vsel %vm535, %v1701, 0
      %v1708 = vsel %vm535, %v1703, 0
      %1710 = vmatprep.subr.bf16.mxu0 0
      %1711 = vmatpush1.bf16.xpose.msra.mxu0 0
      %1712 = vmatprep.subr.bf16.mxu0 0
      %1713 = vmatpush1.bf16.xpose.msra.mxu0 0
      %1714 = vmatprep.subr.bf16.mxu0 0
      %1715 = vmatpush1.bf16.xpose.msra.mxu0 0
      %1716 = vmatprep.subr.bf16.mxu0 0
      %1717 = vmatpush1.bf16.xpose.msra.mxu0 0
      %1718 = vmatprep.subr.bf16.mxu0 0
      %1719 = vmatpush1.bf16.xpose.msra.mxu0 0
      %1720 = vmatprep.subr.bf16.mxu0 0
      %1721 = vmatpush1.bf16.xpose.msra.mxu0 0
      %1722 = vmatprep.subr.bf16.mxu0 0
      %1723 = vmatpush1.bf16.xpose.msra.mxu0 0
      %1724 = vmatprep.subr.bf16.mxu0 0
      %1725 = vmatpush1.bf16.xpose.msra.mxu0 %v1708
      %1726 = vmatprep.subr.bf16.mxu0 0
      %1727 = vmatpush2.bf16.xpose.msra.mxu0 0
      %1728 = vmatprep.subr.bf16.mxu0 0
      %1729 = vmatpush2.bf16.xpose.msra.mxu0 0
      %1730 = vmatprep.subr.bf16.mxu0 0
      %1731 = vmatpush2.bf16.xpose.msra.mxu0 0
      %1732 = vmatprep.subr.bf16.mxu0 0
      %1733 = vmatpush2.bf16.xpose.msra.mxu0 0
      %1734 = vmatprep.subr.bf16.mxu0 0
      %1735 = vmatpush2.bf16.xpose.msra.mxu0 0
      %1736 = vmatprep.subr.bf16.mxu0 0
      %1737 = vmatpush2.bf16.xpose.msra.mxu0 0
      %1738 = vmatprep.subr.bf16.mxu0 0
      %1739 = vmatpush2.bf16.xpose.msra.mxu0 0
      %1740 = vmatprep.subr.bf16.mxu0 0
      %1741 = vmatpush2.bf16.xpose.msra.mxu0 0
      %1742 = vmatprep.mubr.bf16.mxu0 0
      %1743 = vmatmul.mubr.bf16.gmra.mxu0 %v1705
      %v1744 = vpop.f32.mrf.mxu0
      %v1745 = vadd.f32 %v1693, %v1744
      %v1746 = vpop.f32.mrf.mxu0
      %v1747 = vpop.f32.mrf.mxu0
      %v1748 = vadd.f32 %v1696, %v1747
      %v1749 = vpop.f32.mrf.mxu0
      %1750 = vdwg.mxu0
      %v1751 = vadd.f32 %v1745, %v366
      %v1752 = vadd.f32 %v1748, %v366
      %v1753 = vsel %vm633, %v1751, -inf
      %1754 = vmax.xlane.f32.xlu0 %v1753
      %v1755 = vpop.xlane.xlu0 %1754
      %v1756 = vsel %vm633, %v1752, -inf
      %1757 = vmax.xlane.f32.xlu0 %v1756
      %v1758 = vpop.xlane.xlu0 %1757
      %v1759 = vsub.f32 %v1751, %v1755
      %v1760 = vsub.f32 %v1752, %v1758
      %v1761 = vmul.f32 %v1759, 1.442695
      %v1762 = vpow.pop %v1761
      %v1763 = vmul.f32 %v1760, 1.442695
      %v1764 = vpow.pop %v1763
      %v1765 = vsel %vm633, %v1762, 0.0
      %1766 = vadd.xlane.f32.xlu0 %v1765
      %v1767 = vpop.xlane.xlu0 %1766
      %v1768 = vsel %vm633, %v1764, 0.0
      %1769 = vadd.xlane.f32.xlu0 %v1768
      %v1770 = vpop.xlane.xlu0 %1769
      %v1771 = vpack.c.bf16 %v1764, %v1762
      %1772 = vrot.lane.b32.xlu0 %v1363, 72
      %v1773 = vpop.permute.xlu0 %1772
      %v1775 = vsel %vm633, %v1771, 0
      %v1778 = vsel %vm521, %v1773, 0
      %1780 = vmatprep.subr.bf16.mxu0 0
      %1781 = vmatpush1.bf16.msra.mxu0 0
      %1782 = vmatprep.subr.bf16.mxu0 0
      %1783 = vmatpush1.bf16.msra.mxu0 0
      %1784 = vmatprep.subr.bf16.mxu0 0
      %1785 = vmatpush1.bf16.msra.mxu0 0
      %1786 = vmatprep.subr.bf16.mxu0 0
      %1787 = vmatpush1.bf16.msra.mxu0 0
      %1788 = vmatprep.subr.bf16.mxu0 0
      %1789 = vmatpush1.bf16.msra.mxu0 0
      %1790 = vmatprep.subr.bf16.mxu0 0
      %1791 = vmatpush1.bf16.msra.mxu0 0
      %1792 = vmatprep.subr.bf16.mxu0 0
      %1793 = vmatpush1.bf16.msra.mxu0 0
      %1794 = vmatprep.subr.bf16.mxu0 0
      %1795 = vmatpush1.bf16.msra.mxu0 %v1778
      %1796 = vmatprep.subr.bf16.mxu0 0
      %1797 = vmatpush2.bf16.msra.mxu0 0
      %1798 = vmatprep.subr.bf16.mxu0 0
      %1799 = vmatpush2.bf16.msra.mxu0 0
      %1800 = vmatprep.subr.bf16.mxu0 0
      %1801 = vmatpush2.bf16.msra.mxu0 0
      %1802 = vmatprep.subr.bf16.mxu0 0
      %1803 = vmatpush2.bf16.msra.mxu0 0
      %1804 = vmatprep.subr.bf16.mxu0 0
      %1805 = vmatpush2.bf16.msra.mxu0 0
      %1806 = vmatprep.subr.bf16.mxu0 0
      %1807 = vmatpush2.bf16.msra.mxu0 0
      %1808 = vmatprep.subr.bf16.mxu0 0
      %1809 = vmatpush2.bf16.msra.mxu0 0
      %1810 = vmatprep.subr.bf16.mxu0 0
      %1811 = vmatpush2.bf16.msra.mxu0 0
      %1812 = vmatprep.mubr.bf16.mxu0 0
      %1813 = vmatmul.mubr.bf16.gmra.mxu0 %v1775
      %v1814 = vpop.f32.mrf.mxu0
      %v1815 = vadd.f32 0.0, %v1814
      %v1816 = vpop.f32.mrf.mxu0
      %v1817 = vpop.f32.mrf.mxu0
      %v1818 = vadd.f32 0.0, %v1817
      %v1819 = vpop.f32.mrf.mxu0
      %1820 = vdwg.mxu0
      %v1821 = vrcp.pop %v1767
      %v1822 = vrcp.pop %v1770
      %v1823 = vmul.f32 %v1815, %v1821
      %v1824 = vmul.f32 %v1818, %v1822
      %v1825 = vpack.c.bf16 %v1823, %v1823
      %v1827 = vsel %vm633, %v1825, 0
      %v1830 = vsel %vm521, %v1240, 0
      %1832 = vmatprep.subr.bf16.mxu0 0
      %1833 = vmatpush1.bf16.msra.mxu0 0
      %1834 = vmatprep.subr.bf16.mxu0 0
      %1835 = vmatpush1.bf16.msra.mxu0 0
      %1836 = vmatprep.subr.bf16.mxu0 0
      %1837 = vmatpush1.bf16.msra.mxu0 0
      %1838 = vmatprep.subr.bf16.mxu0 0
      %1839 = vmatpush1.bf16.msra.mxu0 0
      %1840 = vmatprep.subr.bf16.mxu0 0
      %1841 = vmatpush1.bf16.msra.mxu0 0
      %1842 = vmatprep.subr.bf16.mxu0 0
      %1843 = vmatpush1.bf16.msra.mxu0 0
      %1844 = vmatprep.subr.bf16.mxu0 0
      %1845 = vmatpush1.bf16.msra.mxu0 0
      %1846 = vmatprep.subr.bf16.mxu0 0
      %1847 = vmatpush1.bf16.msra.mxu0 %v1830
      %1848 = vmatprep.subr.bf16.mxu0 0
      %1849 = vmatpush2.bf16.msra.mxu0 0
      %1850 = vmatprep.subr.bf16.mxu0 0
      %1851 = vmatpush2.bf16.msra.mxu0 0
      %1852 = vmatprep.subr.bf16.mxu0 0
      %1853 = vmatpush2.bf16.msra.mxu0 0
      %1854 = vmatprep.subr.bf16.mxu0 0
      %1855 = vmatpush2.bf16.msra.mxu0 0
      %1856 = vmatprep.subr.bf16.mxu0 0
      %1857 = vmatpush2.bf16.msra.mxu0 0
      %1858 = vmatprep.subr.bf16.mxu0 0
      %1859 = vmatpush2.bf16.msra.mxu0 0
      %1860 = vmatprep.subr.bf16.mxu0 0
      %1861 = vmatpush2.bf16.msra.mxu0 0
      %1862 = vmatprep.subr.bf16.mxu0 0
      %1863 = vmatpush2.bf16.msra.mxu0 0
      %1864 = vmatprep.mubr.bf16.mxu0 0
      %1865 = vmatmul.mubr.bf16.gmra.mxu0 %v1827
      %v1866 = vpop.f32.mrf.mxu0
      %v1867 = vadd.f32 0.0, %v1866
      %v1868 = vpop.f32.mrf.mxu0
      %v1869 = vpop.f32.mrf.mxu0
      %v1870 = vpop.f32.mrf.mxu0
      %1871 = vdwg.mxu0
      %v1872 = vadd.f32 %v1646, %v1867
      %v1873 = vpack.c.bf16 %v1824, %v1824
      %v1875 = vsel %vm633, %v1873, 0
      %v1878 = vsel %vm521, %v1241, 0
      %1880 = vmatprep.subr.bf16.mxu0 0
      %1881 = vmatpush1.bf16.msra.mxu0 0
      %1882 = vmatprep.subr.bf16.mxu0 0
      %1883 = vmatpush1.bf16.msra.mxu0 0
      %1884 = vmatprep.subr.bf16.mxu0 0
      %1885 = vmatpush1.bf16.msra.mxu0 0
      %1886 = vmatprep.subr.bf16.mxu0 0
      %1887 = vmatpush1.bf16.msra.mxu0 0
      %1888 = vmatprep.subr.bf16.mxu0 0
      %1889 = vmatpush1.bf16.msra.mxu0 0
      %1890 = vmatprep.subr.bf16.mxu0 0
      %1891 = vmatpush1.bf16.msra.mxu0 0
      %1892 = vmatprep.subr.bf16.mxu0 0
      %1893 = vmatpush1.bf16.msra.mxu0 0
      %1894 = vmatprep.subr.bf16.mxu0 0
      %1895 = vmatpush1.bf16.msra.mxu0 %v1878
      %1896 = vmatprep.subr.bf16.mxu0 0
      %1897 = vmatpush2.bf16.msra.mxu0 0
      %1898 = vmatprep.subr.bf16.mxu0 0
      %1899 = vmatpush2.bf16.msra.mxu0 0
      %1900 = vmatprep.subr.bf16.mxu0 0
      %1901 = vmatpush2.bf16.msra.mxu0 0
      %1902 = vmatprep.subr.bf16.mxu0 0
      %1903 = vmatpush2.bf16.msra.mxu0 0
      %1904 = vmatprep.subr.bf16.mxu0 0
      %1905 = vmatpush2.bf16.msra.mxu0 0
      %1906 = vmatprep.subr.bf16.mxu0 0
      %1907 = vmatpush2.bf16.msra.mxu0 0
      %1908 = vmatprep.subr.bf16.mxu0 0
      %1909 = vmatpush2.bf16.msra.mxu0 0
      %1910 = vmatprep.subr.bf16.mxu0 0
      %1911 = vmatpush2.bf16.msra.mxu0 0
      %1912 = vmatprep.mubr.bf16.mxu0 0
      %1913 = vmatmul.mubr.bf16.gmra.mxu0 %v1875
      %v1914 = vpop.f32.mrf.mxu0
      %v1915 = vadd.f32 0.0, %v1914
      %v1916 = vpop.f32.mrf.mxu0
      %v1917 = vpop.f32.mrf.mxu0
      %v1918 = vpop.f32.mrf.mxu0
      %1919 = vdwg.mxu0
      %v1920 = vadd.f32 %v1872, %v1915
      %v1921 = vmul.f32 %v1920, %v1920
      %v1922 = vsel %vm390, %v1921, 0.0
      %1923 = vadd.xlane.f32.xlu0 %v1922
      %v1924 = vpop.xlane.xlu0 %1923
      %v1925 = vmul.f32 %v1924, %v394
      %v1926 = vadd.f32 %v1925, 1e-06
      %v1927 = vrsqrt.pop %v1926
      %v1928 = vmul.f32 %v1920, %v1927
      %v1930 = vlaneseq
      %v1931 = vshrl.u32 %v1930, 7
      %v1932 = vsub.s32 0, %v1931
      %v1933 = vrot.slane %v1259, %v1932
      %v1935 = vmul.f32 %v1928, %v1933
      %v1936 = vpack.c.bf16 %v1935, %v1935
      %v1941 = vunpack.c.l.b16 %v1243
      %v1942 = vunpack.c.l.b16 %v1244
      %v1943 = vunpack.c.l.b16 %v1245
      %v1944 = vunpack.c.l.b16 %v1246
      %v1945 = vpack.c.b16 %v1942, %v1941
      %v1946 = vpack.c.b16 %v1944, %v1943
      %v1950 = vsel %vm390, %v1936, 0
      %1952 = vmatprep.subr.bf16.mxu0 0
      %1953 = vmatpush1.bf16.msra.mxu0 0
      %1954 = vmatprep.subr.bf16.mxu0 0
      %1955 = vmatpush1.bf16.msra.mxu0 0
      %1956 = vmatprep.subr.bf16.mxu0 0
      %1957 = vmatpush1.bf16.msra.mxu0 0
      %1958 = vmatprep.subr.bf16.mxu0 0
      %1959 = vmatpush1.bf16.msra.mxu0 0
      %1960 = vmatprep.subr.bf16.mxu0 0
      %1961 = vmatpush1.bf16.msra.mxu0 0
      %1962 = vmatprep.subr.bf16.mxu0 0
      %1963 = vmatpush1.bf16.msra.mxu0 0
      %1964 = vmatprep.subr.bf16.mxu0 0
      %1965 = vmatpush1.bf16.msra.mxu0 %v1946
      %1966 = vmatprep.subr.bf16.mxu0 0
      %1967 = vmatpush1.bf16.msra.mxu0 %v1945
      %1968 = vmatprep.subr.bf16.mxu0 0
      %1969 = vmatpush2.bf16.msra.mxu0 0
      %1970 = vmatprep.subr.bf16.mxu0 0
      %1971 = vmatpush2.bf16.msra.mxu0 0
      %1972 = vmatprep.subr.bf16.mxu0 0
      %1973 = vmatpush2.bf16.msra.mxu0 0
      %1974 = vmatprep.subr.bf16.mxu0 0
      %1975 = vmatpush2.bf16.msra.mxu0 0
      %1976 = vmatprep.subr.bf16.mxu0 0
      %1977 = vmatpush2.bf16.msra.mxu0 0
      %1978 = vmatprep.subr.bf16.mxu0 0
      %1979 = vmatpush2.bf16.msra.mxu0 0
      %1980 = vmatprep.subr.bf16.mxu0 0
      %1981 = vmatpush2.bf16.msra.mxu0 0
      %1982 = vmatprep.subr.bf16.mxu0 0
      %1983 = vmatpush2.bf16.msra.mxu0 0
      %1984 = vmatprep.mubr.bf16.mxu0 0
      %1985 = vmatmul.mubr.bf16.gmra.mxu0 %v1950
      %v1986 = vpop.f32.mrf.mxu0
      %v1987 = vadd.f32 0.0, %v1986
      %v1988 = vpop.f32.mrf.mxu0
      %v1989 = vpop.f32.mrf.mxu0
      %v1990 = vpop.f32.mrf.mxu0
      %1991 = vdwg.mxu0
      %v1992 = vmul.f32 %v1987, 0.5
      %v1993 = vmul.f32 %v1987, 0.044715
      %v1994 = vmul.f32 %v1993, %v1987
      %v1995 = vmul.f32 %v1994, %v1987
      %v1996 = vadd.f32 %v1987, %v1995
      %v1997 = vmul.f32 %v1996, 0.7978846
      %v1998 = vtanh.pop %v1997
      %v1999 = vadd.f32 %v1998, 1.0
      %v2000 = vmul.f32 %v1992, %v1999
      %2002 = vrot.lane.b32.xlu0 %v1987, 64
      %v2003 = vpop.permute.xlu0 %2002
      %v2005 = vmul.f32 %v2000, %v2003
      %v2006 = vpack.c.bf16 %v2005, %v2005
      %v2015 = vunpack.c.l.b16 %v1248
      %v2016 = vunpack.c.l.b16 %v1249
      %v2017 = vunpack.c.l.b16 %v1250
      %v2018 = vunpack.c.l.b16 %v1251
      %v2019 = vunpack.c.l.b16 %v1252
      %v2020 = vunpack.c.l.b16 %v1253
      %v2021 = vunpack.c.l.b16 %v1254
      %v2022 = vunpack.c.l.b16 %v1255
      %v2023 = vpack.c.b16 %v2016, %v2015
      %v2024 = vpack.c.b16 %v2018, %v2017
      %v2025 = vpack.c.b16 %v2020, %v2019
      %v2026 = vpack.c.b16 %v2022, %v2021
      %v2032 = vsel %vm1187, %v2006, 0
      %2034 = vmatprep.subr.bf16.mxu0 0
      %2035 = vmatpush1.bf16.msra.mxu0 0
      %2036 = vmatprep.subr.bf16.mxu0 0
      %2037 = vmatpush1.bf16.msra.mxu0 0
      %2038 = vmatprep.subr.bf16.mxu0 0
      %2039 = vmatpush1.bf16.msra.mxu0 0
      %2040 = vmatprep.subr.bf16.mxu0 0
      %2041 = vmatpush1.bf16.msra.mxu0 0
      %2042 = vmatprep.subr.bf16.mxu0 0
      %2043 = vmatpush1.bf16.msra.mxu0 %v2026
      %2044 = vmatprep.subr.bf16.mxu0 0
      %2045 = vmatpush1.bf16.msra.mxu0 %v2025
      %2046 = vmatprep.subr.bf16.mxu0 0
      %2047 = vmatpush1.bf16.msra.mxu0 %v2024
      %2048 = vmatprep.subr.bf16.mxu0 0
      %2049 = vmatpush1.bf16.msra.mxu0 %v2023
      %2050 = vmatprep.subr.bf16.mxu0 0
      %2051 = vmatpush2.bf16.msra.mxu0 0
      %2052 = vmatprep.subr.bf16.mxu0 0
      %2053 = vmatpush2.bf16.msra.mxu0 0
      %2054 = vmatprep.subr.bf16.mxu0 0
      %2055 = vmatpush2.bf16.msra.mxu0 0
      %2056 = vmatprep.subr.bf16.mxu0 0
      %2057 = vmatpush2.bf16.msra.mxu0 0
      %2058 = vmatprep.subr.bf16.mxu0 0
      %2059 = vmatpush2.bf16.msra.mxu0 0
      %2060 = vmatprep.subr.bf16.mxu0 0
      %2061 = vmatpush2.bf16.msra.mxu0 0
      %2062 = vmatprep.subr.bf16.mxu0 0
      %2063 = vmatpush2.bf16.msra.mxu0 0
      %2064 = vmatprep.subr.bf16.mxu0 0
      %2065 = vmatpush2.bf16.msra.mxu0 0
      %2066 = vmatprep.mubr.bf16.mxu0 0
      %2067 = vmatmul.mubr.bf16.gmra.mxu0 %v2032
      %v2068 = vpop.f32.mrf.mxu0
      %v2069 = vadd.f32 0.0, %v2068
      %v2070 = vpop.f32.mrf.mxu0
      %v2071 = vpop.f32.mrf.mxu0
      %v2072 = vpop.f32.mrf.mxu0
      %2073 = vdwg.mxu0
      %v2074 = vadd.f32 %v1920, %v2069
      %v2075 = vld [vmem:[%s9] sm:$0x1]
      %v2076 = vmul.f32 %v2074, %v2074
      %v2077 = vsel %vm390, %v2076, 0.0
      %2078 = vadd.xlane.f32.xlu0 %v2077
      %v2079 = vpop.xlane.xlu0 %2078
      %v2080 = vmul.f32 %v2079, %v394
      %v2081 = vadd.f32 %v2080, 1e-06
      %v2082 = vrsqrt.pop %v2081
      %v2083 = vmul.f32 %v2074, %v2082
      %v2085 = vlaneseq
      %v2086 = vshrl.u32 %v2085, 7
      %v2087 = vsub.s32 0, %v2086
      %v2088 = vrot.slane %v2075, %v2087
      %v2090 = vmul.f32 %v2083, %v2088
      %v2092 = vrot.slane %v2090, 1
      %2093 = vrot.lane.b32.xlu0 %v2092, 32
      %v2094 = vpop.permute.xlu0 %2093
      %v2096 = vrot.slane %v2090, 2
      %2097 = vrot.lane.b32.xlu0 %v2096, 64
      %v2098 = vpop.permute.xlu0 %2097
      %v2100 = vrot.slane %v2090, 3
      %2101 = vrot.lane.b32.xlu0 %v2100, 96
      %v2102 = vpop.permute.xlu0 %2101
      %v2104 = vrot.slane %v2090, 4
      %v2106 = vrot.slane %v2090, 5
      %2107 = vrot.lane.b32.xlu0 %v2106, 32
      %v2108 = vpop.permute.xlu0 %2107
      %v2110 = vrot.slane %v2090, 6
      %2111 = vrot.lane.b32.xlu0 %v2110, 64
      %v2112 = vpop.permute.xlu0 %2111
      %v2114 = vrot.slane %v2090, 7
      %2115 = vrot.lane.b32.xlu0 %v2114, 96
      %v2116 = vpop.permute.xlu0 %2115
      %v2118 = vsel %vm390, %v2090, %v2094
      %v2119 = vsel %vm1187, %v2118, %v2098
      %vm2120 = vcmask 785408
      %v2121 = vsel %vm2120, %v2119, %v2102
      %v2122 = vsel %vm390, %v2104, %v2108
      %v2123 = vsel %vm1187, %v2122, %v2112
      %v2124 = vsel %vm2120, %v2123, %v2116
      %v2127 = vcombine.low %v2121, %v2124
      %v2129 = vunpack.c.l.s4 1966171168
      %v2130 = vunpack.c.0.s8 %v2129
      %v2131 = vlaneseq
      %v2132 = vshrl.u32 %v2131, 7
      %v2133 = vsub.s32 %v2130, %v2132
      %v2134 = vrot.slane %v2127, %v2133
      %v2136 = vunpack.c.l.s4 1966171168
      %v2137 = vunpack.c.0.s8 %v2136
      %v2138 = vlaneseq
      %v2139 = vshrl.u32 %v2138, 7
      %v2140 = vsub.s32 %v2137, %v2139
      %v2141 = vrot.slane %v2134, %v2140
      %v2143 = vlaneseq
      %vm2144 = vcmp.ge.s32.totalorder %v2143, 0
      %vm2145 = vcmp.lt.s32.totalorder %v2143, 256
      %vm2146 = vmand %vm2144, %vm2145
      %2147 = vst.msk [vmem:[%s354] sm:$0x3] %vm2146, %v2141
      %p2148 = scmp.lt.s32.totalorder %s21, 1
      %s2149 = scalar_select %p2148, %s21, 1
      %s2150 = smul.addr %s2149, 2
      %s2151 = scalar_lea.vmem %s10, %s2150
      // Predicated region
      $region61: #{gemma_forward.1} parent=59 // pred_check
        %p2152 = pneg %p254
      $region62: #{gemma_forward.1} parent=59 // pred_check_branch
        %2154 = sbr.rel (%p2152) target = $region64
      $region63: #{gemma_forward.1} parent=59 // pred_region
        _
      $region64: #{gemma_forward.1} parent=59 // pred_fallthru
        _
    $region60: #{gemma_forward.1} parent=5 // pred_fallthru
      _
    %p2155 = scmp.le.s32.totalorder 2, %s16
    // Predicated region
    $region65: #{gemma_forward.1} parent=5 // pred_check
      %p2156 = pneg %p2155
    $region66: #{gemma_forward.1} parent=5 // pred_check_branch
      %2158 = sbr.rel (%p2156) target = $region68
    $region67: #{gemma_forward.1} parent=5 // pred_region
      %s2159 = ssub.s32 %s16, 2
      // Predicated region
      $region69: #{gemma_forward.1} parent=67 // pred_check
        %p2160 = pneg %p260
      $region70: #{gemma_forward.1} parent=67 // pred_check_branch
        %2162 = sbr.rel (%p2160) target = $region72
      $region71: #{gemma_forward.1} parent=67 // pred_region
        %p2163 = scmp.lt.s32.totalorder %s22, 1
        %s2164 = scalar_select %p2163, %s22, 1
        %s2165 = smul.addr %s2164, 2
        %s2166 = scalar_lea.vmem %s10, %s2165
      $region72: #{gemma_forward.1} parent=67 // pred_fallthru
        _
    $region68: #{gemma_forward.1} parent=5 // pred_fallthru
      _
  $region6: #{gemma_forward.1} parent=0 // loop_footer
    %s20 = sadd.s32 1, %s16
  $region7: #{gemma_forward.1} parent=0 // loop_footer_branch
    %15 = sbr.rel target = $region3
  $region8: #{gemma_forward.1} parent=0 // loop_exit
    _

</llo_original>
